<compile_context>
chip_gen: v6e
topology: v6e:2x2x1
jax: 0.10.0
libtpu: 0.0.40
codegen_flags: <defaults>
</compile_context>

<pallas_src>
import functools
import math

import jax
import jax.numpy as jnp
from jax.experimental import pallas as pl
from jax.experimental.pallas import tpu as pltpu

_LN_EPS = 1e-5  # PyTorch nn.LayerNorm default

_VMEM_LIMIT_BYTES = 48 * 1024 * 1024   # explicit scoped-VMEM override; > v5e/v6e
                                        # 16/32 MiB defaults, < v7x 64 MiB physical.
_VMEM_BLOCK_BUDGET = 40 * 1024 * 1024   # target per-step working set (headroom left).


# ----------------------------- kernel-side math -----------------------------
def _layernorm(t, gamma, beta):
    mu = jnp.mean(t, axis=-1, keepdims=True)
    d = t - mu
    var = jnp.mean(d * d, axis=-1, keepdims=True)
    return d * jax.lax.rsqrt(var + _LN_EPS) * gamma + beta


def _gelu_erf(x):
    # Exact (erf-based) GELU via the 3-term Abramowitz & Stegun 7.1.25
    # polynomial (|erf err| <= 2.5e-5).  The 1/(1 + p|z|) divide is routed to
    # the EUP via the approximate reciprocal instead of occupying a VPU slot.
    # Kept in f32: v5e's VPU/EUP have no bf16 path (bf16 GELU on v6e/v7x would
    # be a generation-specific follow-up).
    z = x * 0.7071067811865476
    az = jnp.abs(z)
    t = pl.reciprocal(1.0 + 0.47047 * az, approx=True)
    poly = ((0.7478556 * t - 0.0958798) * t + 0.3480242) * t
    erf_abs = 1.0 - poly * jnp.exp(-az * az)
    erf_z = jnp.where(z >= 0.0, erf_abs, -erf_abs)
    return 0.5 * x * (1.0 + erf_z)


def _sab_kernel(x_ref, wqkv_ref, bqkv_ref, g0_ref, be0_ref,
                w1_ref, b1_ref, w2_ref, b2_ref, g1_ref, be1_ref,
                o_ref, *, dim_hidden, n_obs):
    rows = x_ref.shape[0]          # Bt * N rows per grid step
    H = dim_hidden
    N = n_obs
    Bt = rows // N
    mm_dtype = wqkv_ref.dtype      # bf16 MXU operand dtype

    # Cast the streamed f32 block to the MXU operand dtype *inside* the kernel
    # (VPU op hidden under the MXU) — no wrapper-side cast pass over HBM.
    x = x_ref[...].astype(mm_dtype)

    # Fused Q|K|V projection: one (rows,Cin)x(Cin,3H) bf16 MXU matmul, f32 acc.
    # The 1/sqrt(H) attention scale is pre-folded into the K columns/bias.
    qkv = jnp.dot(x, wqkv_ref[...],
                  preferred_element_type=jnp.float32) + bqkv_ref[...]
    q = qkv[:, 0 * H:1 * H].reshape(Bt, N, H)
    k = qkv[:, 1 * H:2 * H].reshape(Bt, N, H)
    v = qkv[:, 2 * H:3 * H].reshape(Bt, N, H)

    # Single-head attention over the observation (set) axis, batched on Bt.
    # Contract trailing dims directly (no explicit transpose); bf16 operands,
    # f32 accumulation.
    s = jnp.einsum("bnd,bmd->bnm", q.astype(mm_dtype), k.astype(mm_dtype),
                   preferred_element_type=jnp.float32)
    s = s - jnp.max(s, axis=-1, keepdims=True)
    e = jnp.exp(s)
    a = e * pl.reciprocal(jnp.sum(e, axis=-1, keepdims=True), approx=True)
    o = q + jnp.einsum("bnm,bmd->bnd", a.astype(mm_dtype), v.astype(mm_dtype),
                       preferred_element_type=jnp.float32)
    o = o.reshape(rows, H)

    # LayerNorm 0 (f32).
    o = _layernorm(o, g0_ref[...], be0_ref[...])

    # FFN with residual: bf16 MXU matmuls, f32 accumulate + f32 elementwise.
    h = jnp.dot(o.astype(mm_dtype), w1_ref[...],
                preferred_element_type=jnp.float32) + b1_ref[...]
    h = _gelu_erf(h)
    f = jnp.dot(h.astype(mm_dtype), w2_ref[...],
                preferred_element_type=jnp.float32) + b2_ref[...]
    o = o + f

    # LayerNorm 1 (f32), then store in the (default bf16) output dtype.
    o = _layernorm(o, g1_ref[...], be1_ref[...])
    o_ref[...] = o.astype(o_ref.dtype)


# ----------------------------- block-size selection -----------------------------
def _cap_rows_for_vmem(target_rows, cin, H, F, N, x_bytes, out_bytes):
    """Cap rows/step so the double-buffered streams + f32 intermediates fit
    the VMEM budget (matters on v7x: 64 MiB physical, not 128 MiB)."""
    per_row = 2 * (cin * x_bytes + H * out_bytes)      # double-buffered x / out
    per_row += 4 * (3 * H + F + 2 * H) + 4 * N         # qkv, ffn hidden, residual, scores
    weights = 2 * 2 * (cin * 3 * H + 2 * H * F)        # bf16 weights, double-buffered
    budget = max(_VMEM_BLOCK_BUDGET - weights, per_row * N)
    return max(N, min(target_rows, budget // per_row))


def _choose_block_batch(B, N, target_rows, row_align):
    """Batch elements per grid step.  Prefers >=4 (at least >=2) grid steps
    (software pipelining + v7x megacore sharding), sublane-aligned Bt*N, and
    ~target_rows rows per step.  Falls back to the full extent (grid=(1,),
    always layout-legal) only when no aligned multi-step split exists."""
    per = max(N, 1)
    desired = max(1, min(B, max(1, target_rows // per)))

    def candidates(min_steps):
        cap = B // min_steps
        below = [bt for bt in range(min(desired, cap), 0, -1)
                 if B % bt == 0 and (bt * per) % row_align == 0]
        above = [bt for bt in range(min(desired, cap) + 1, cap + 1)
                 if B % bt == 0 and (bt * per) % row_align == 0]
        return below + above            # closest-below first, then smallest-above

    for min_steps in (4, 2):
        if B >= min_steps:
            c = candidates(min_steps)
            if c:
                return c[0]
    # TODO(synk): pad B*N up to the sublane alignment instead of collapsing the
    # grid to a single step for awkward (B, N) combinations.
    return B


# ----------------------------- parameter prep (one-time, outside jit) ------------
def prepare_sab_params(p, dim_hidden, matmul_dtype=jnp.bfloat16):
    """Pack/fuse Q|K|V, fold 1/sqrt(H) into the K columns, cast MXU weights to
    bf16.  Done once per model, NOT per forward call."""
    scale = 1.0 / math.sqrt(dim_hidden)
    wqkv = jnp.concatenate([p["wq"], p["wk"] * scale, p["wv"]],
                           axis=1).astype(matmul_dtype)                  # (Cin, 3H)
    bqkv = jnp.concatenate([p["bq"], p["bk"] * scale, p["bv"]],
                           axis=1).astype(jnp.float32)                   # (1, 3H)
    return dict(
        wqkv=wqkv, bqkv=bqkv,
        g0=p["g0"], be0=p["be0"],
        w1=p["w1"].astype(matmul_dtype), b1=p["b1"],
        w2=p["w2"].astype(matmul_dtype), b2=p["b2"],
        g1=p["g1"], be1=p["be1"],
    )


# ----------------------------- pallas_call wrapper -----------------------------
def sab_pallas(x, prep, dim_hidden, *, out_dtype=jnp.bfloat16, target_rows=2048):
    """One SAB block. x: (B, N, Cin) -> (B, N, dim_hidden) in `out_dtype`."""
    B, N, Cin = x.shape
    H = dim_hidden
    F = prep["w1"].shape[1]

    x2 = x.reshape(B * N, Cin)                 # metadata-only; NO dtype cast here
    x_bytes = x2.dtype.itemsize
    out_bytes = jnp.dtype(out_dtype).itemsize
    row_align = 16 if min(x_bytes, out_bytes) == 2 else 8

    rows_target = _cap_rows_for_vmem(target_rows, Cin, H, F, N, x_bytes, out_bytes)
    Bt = _choose_block_batch(B, N, rows_target, row_align)
    rows_blk = Bt * N

    def resident(shape):
        # Constant index map -> the pipeline reuses the same block every step.
        # TODO(synk): add pipeline_mode=pl.Buffered(1) to drop the (tiny, ~0.2 MiB)
        # double buffering of these weights once verified to lower on the target jax.
        return pl.BlockSpec(shape, lambda b: (0, 0))

    in_specs = [
        pl.BlockSpec((rows_blk, Cin), lambda b: (b, 0)),          # x rows (f32)
        resident((Cin, 3 * H)), resident((1, 3 * H)),             # wqkv, bqkv
        resident((1, H)), resident((1, H)),                       # ln0 gamma/beta
        resident((H, F)), resident((1, F)),                       # w1, b1
        resident((F, H)), resident((1, H)),                       # w2, b2
        resident((1, H)), resident((1, H)),                       # ln1 gamma/beta
    ]

    kernel = functools.partial(_sab_kernel, dim_hidden=H, n_obs=N)
    out = pl.pallas_call(
        kernel,
        out_shape=jax.ShapeDtypeStruct((B * N, H), out_dtype),
        grid_spec=pltpu.PrefetchScalarGridSpec(
            num_scalar_prefetch=0,
            grid=(B // Bt,),
            in_specs=in_specs,
            out_specs=pl.BlockSpec((rows_blk, H), lambda b: (b, 0)),
        ),
        compiler_params=pltpu.CompilerParams(
            dimension_semantics=("parallel",),
            vmem_limit_bytes=_VMEM_LIMIT_BYTES,
        ),
    )(x2, prep["wqkv"], prep["bqkv"], prep["g0"], prep["be0"],
      prep["w1"], prep["b1"], prep["w2"], prep["b2"], prep["g1"], prep["be1"])
    return out.reshape(B, N, H)


def glc_upsample_forward(x, prepped_layers, dim_hidden, *, out_dtype=jnp.bfloat16,
                         target_rows=2048):
    """CommunicationBlock: sequential SAB blocks (bf16 hand-off between layers)."""
    # TODO(synk): for num_enc_sab > 1, fuse all layers into one pallas_call so
    # activations stay in VMEM between layers.
    n = len(prepped_layers)
    for i, p in enumerate(prepped_layers):
        dt = out_dtype if i == n - 1 else jnp.bfloat16
        x = sab_pallas(x, p, dim_hidden, out_dtype=dt, target_rows=target_rows)
    return x


# ----------------------------- references (plain JAX) -----------------------------
_HI = jax.lax.Precision.HIGHEST


def _ln_ref(t, g, b):
    mu = t.mean(-1, keepdims=True)
    var = ((t - mu) ** 2).mean(-1, keepdims=True)
    return (t - mu) * jax.lax.rsqrt(var + _LN_EPS) * g + b


def _sab_ref_matched(x, prep, H):
    """Rounding-matched reference: mirrors every bf16 operand rounding the
    kernel performs, with HIGHEST-precision f32 accumulation, exact softmax and
    exact-erf GELU.  Remaining deltas vs the kernel are only the approximate
    EUP reciprocals and the A&S erf polynomial."""
    B, N, _ = x.shape
    mm = prep["wqkv"].dtype
    r = lambda t: t.astype(mm).astype(jnp.float32)
    xb = r(x.reshape(B * N, -1))
    qkv = jnp.matmul(xb, prep["wqkv"].astype(jnp.float32), precision=_HI) + prep["bqkv"]
    q = qkv[:, :H].reshape(B, N, H)
    k = qkv[:, H:2 * H].reshape(B, N, H)
    v = qkv[:, 2 * H:].reshape(B, N, H)
    s = jnp.einsum("bnd,bmd->bnm", r(q), r(k), precision=_HI)
    a = jax.nn.softmax(s, axis=-1)
    o = q + jnp.einsum("bnm,bmd->bnd", r(a), r(v), precision=_HI)
    o = _ln_ref(o.reshape(B * N, H), prep["g0"], prep["be0"])
    h = jnp.matmul(r(o), prep["w1"].astype(jnp.float32), precision=_HI) + prep["b1"]
    h = jax.nn.gelu(h, approximate=False)
    f = jnp.matmul(r(h), prep["w2"].astype(jnp.float32), precision=_HI) + prep["b2"]
    o = _ln_ref(o + f, prep["g1"], prep["be1"])
    return o.reshape(B, N, H)


def _sab_ref_f32(x, p, H):
    """Pure-f32 reference with PyTorch SAB semantics."""
    B, N, _ = x.shape
    x2 = x.reshape(B * N, -1)
    q = (jnp.matmul(x2, p["wq"], precision=_HI) + p["bq"]).reshape(B, N, H)
    k = (jnp.matmul(x2, p["wk"], precision=_HI) + p["bk"]).reshape(B, N, H)
    v = (jnp.matmul(x2, p["wv"], precision=_HI) + p["bv"]).reshape(B, N, H)
    s = jnp.einsum("bnd,bmd->bnm", q, k, precision=_HI) / math.sqrt(H)
    a = jax.nn.softmax(s, axis=-1)
    o = q + jnp.einsum("bnm,bmd->bnd", a, v, precision=_HI)
    o = _ln_ref(o.reshape(B * N, H), p["g0"], p["be0"])
    h = jax.nn.gelu(jnp.matmul(o, p["w1"], precision=_HI) + p["b1"], approximate=False)
    o = o + jnp.matmul(h, p["w2"], precision=_HI) + p["b2"]
    return _ln_ref(o, p["g1"], p["be1"]).reshape(B, N, H)


def _matched_forward(x, prepped_layers, H):
    for p in prepped_layers:
        x = _sab_ref_matched(x, p, H)
    return x


def _f32_forward(x, raw_layers, H):
    for p in raw_layers:
        x = _sab_ref_f32(x, p, H)
    return x


# ----------------------------- parameter construction -----------------------------
def make_sab_params(key, dim_in, dim_hidden, dim_ff):
    ks = jax.random.split(key, 10)

    def lin(kw, kb, fan_in, fan_out):
        w = jax.random.normal(kw, (fan_in, fan_out), jnp.float32) * (1.0 / math.sqrt(fan_in))
        b = jax.random.normal(kb, (1, fan_out), jnp.float32) * 0.01
        return w, b

    wq, bq = lin(ks[0], ks[1], dim_in, dim_hidden)
    wk, bk = lin(ks[2], ks[3], dim_in, dim_hidden)
    wv, bv = lin(ks[4], ks[5], dim_in, dim_hidden)
    w1, b1 = lin(ks[6], ks[7], dim_hidden, dim_ff)
    w2, b2 = lin(ks[8], ks[9], dim_ff, dim_hidden)
    return dict(
        wq=wq, bq=bq, wk=wk, bk=bk, wv=wv, bv=bv,
        g0=jnp.ones((1, dim_hidden), jnp.float32),
        be0=jnp.zeros((1, dim_hidden), jnp.float32),
        w1=w1, b1=b1, w2=w2, b2=b2,
        g1=jnp.ones((1, dim_hidden), jnp.float32),
        be1=jnp.zeros((1, dim_hidden), jnp.float32),
    )


if __name__ == "__main__":
    # Small but representative shapes: B pixel groups, N observations (set axis),
    # input_nc channels.  With B=8, the >=4-step grid preference gives Bt=2,
    # grid=(4,) — exercises the pipelined, megacore-shardable path.
    B, N = 8, 8
    input_nc = 32
    num_enc_sab = 1
    dim_hidden = 128
    dim_feedforward = 256

    key = jax.random.PRNGKey(0)
    kx, kp = jax.random.split(key)
    x = jax.random.normal(kx, (B, N, input_nc), jnp.float32)

    raw_layers, dim_in = [], input_nc
    for pk in jax.random.split(kp, num_enc_sab):
        raw_layers.append(make_sab_params(pk, dim_in, dim_hidden, dim_feedforward))
        dim_in = dim_hidden
    # One-time parameter prep (QKV fusion, scale folding, bf16 casts) — outside jit.
    prepped = [prepare_sab_params(p, dim_hidden) for p in raw_layers]

    fwd_bf16 = jax.jit(lambda xi, ps: glc_upsample_forward(xi, ps, dim_hidden))
    fwd_f32 = jax.jit(lambda xi, ps: glc_upsample_forward(xi, ps, dim_hidden,
                                                          out_dtype=jnp.float32))

    out_f32 = jax.block_until_ready(fwd_f32(x, prepped))
    out_bf16 = jax.block_until_ready(fwd_bf16(x, prepped))
    assert out_f32.shape == (B, N, dim_hidden)
    assert out_bf16.shape == (B, N, dim_hidden) and out_bf16.dtype == jnp.bfloat16

    ref_matched = _matched_forward(x, prepped, dim_hidden)
    ref_f32 = _f32_forward(x, raw_layers, dim_hidden)

    err_matched = float(jnp.max(jnp.abs(out_f32 - ref_matched)))
    err_store = float(jnp.max(jnp.abs(out_bf16.astype(jnp.float32) - ref_matched)))
    err_f32 = float(jnp.max(jnp.abs(out_f32 - ref_f32)))
    print(f"max|err| vs rounding-matched ref: {err_matched:.3e}  "
          f"(bf16-stored output: {err_store:.3e})  vs pure-f32 ref: {err_f32:.3e}")

    # The matched reference mirrors every bf16 operand rounding, so this bound
    # only has to absorb the approx-reciprocal softmax and the A&S erf GELU
    # polynomial — a genuinely tight check of the kernel implementation.
    assert err_matched < 1e-2, f"kernel mismatch vs rounding-matched ref: {err_matched}"
    # bf16 output adds only the final store rounding on top of the above.
    assert err_store < 5e-2, f"bf16-output mismatch vs matched ref: {err_store}"
    # Deviation vs pure-f32 PyTorch semantics is dominated by the intended bf16
    # MXU operand rounding.
    assert err_f32 < 1e-1, f"mismatch vs f32 reference: {err_f32}"

    print("KERNEL_OK")
</pallas_src>

<mosaic_0001>
module attributes {stable_mosaic.version = 11 : i64} {
  func.func @_sab_kernel(%arg0: i32, %arg1: memref<16x32xf32, #tpu.memory_space<vmem>>, %arg2: memref<32x384xbf16, #tpu.memory_space<vmem>>, %arg3: memref<1x384xf32, #tpu.memory_space<vmem>>, %arg4: memref<1x128xf32, #tpu.memory_space<vmem>>, %arg5: memref<1x128xf32, #tpu.memory_space<vmem>>, %arg6: memref<128x256xbf16, #tpu.memory_space<vmem>>, %arg7: memref<1x256xf32, #tpu.memory_space<vmem>>, %arg8: memref<256x128xbf16, #tpu.memory_space<vmem>>, %arg9: memref<1x128xf32, #tpu.memory_space<vmem>>, %arg10: memref<1x128xf32, #tpu.memory_space<vmem>>, %arg11: memref<1x128xf32, #tpu.memory_space<vmem>>, %arg12: memref<16x128xf32, #tpu.memory_space<vmem>>) attributes {dimension_semantics = [#tpu.dimension_semantics<parallel>], iteration_bounds = array<i64: 4>, scalar_prefetch = 0 : i64, scratch_operands = 0 : i64, tpu.core_type = #tpu.core_type<tc>, window_params = [{transform_indices = @transform_0, window_bounds = array<i64: 16, 32>}, {pipeline_mode = #tpu.pipeline_mode<synchronous>, transform_indices = @transform_1, window_bounds = array<i64: 32, 384>}, {pipeline_mode = #tpu.pipeline_mode<synchronous>, transform_indices = @transform_2, window_bounds = array<i64: 1, 384>}, {pipeline_mode = #tpu.pipeline_mode<synchronous>, transform_indices = @transform_3, window_bounds = array<i64: 1, 128>}, {pipeline_mode = #tpu.pipeline_mode<synchronous>, transform_indices = @transform_4, window_bounds = array<i64: 1, 128>}, {pipeline_mode = #tpu.pipeline_mode<synchronous>, transform_indices = @transform_5, window_bounds = array<i64: 128, 256>}, {pipeline_mode = #tpu.pipeline_mode<synchronous>, transform_indices = @transform_6, window_bounds = array<i64: 1, 256>}, {pipeline_mode = #tpu.pipeline_mode<synchronous>, transform_indices = @transform_7, window_bounds = array<i64: 256, 128>}, {pipeline_mode = #tpu.pipeline_mode<synchronous>, transform_indices = @transform_8, window_bounds = array<i64: 1, 128>}, {pipeline_mode = #tpu.pipeline_mode<synchronous>, transform_indices = @transform_9, window_bounds = array<i64: 1, 128>}, {pipeline_mode = #tpu.pipeline_mode<synchronous>, transform_indices = @transform_10, window_bounds = array<i64: 1, 128>}, {transform_indices = @transform_11, window_bounds = array<i64: 16, 128>}]} {
    %c0 = arith.constant 0 : index
    %c0_0 = arith.constant 0 : index
    %0 = vector.load %arg1[%c0, %c0_0] : memref<16x32xf32, #tpu.memory_space<vmem>>, vector<16x32xf32>
    %1 = arith.truncf %0 : vector<16x32xf32> to vector<16x32xbf16>
    %c0_1 = arith.constant 0 : index
    %c0_2 = arith.constant 0 : index
    %2 = vector.load %arg2[%c0_1, %c0_2] : memref<32x384xbf16, #tpu.memory_space<vmem>>, vector<32x384xbf16>
    %cst = arith.constant dense<0.000000e+00> : vector<16x384xf32>
    %3 = tpu.matmul %1, %2, %cst {dimension_numbers = #tpu.dot_dimension_numbers<[1], [0], [0], [1], [0, 0, 1, 1], [], []>} : vector<16x32xbf16>, vector<32x384xbf16>, vector<16x384xf32> -> vector<16x384xf32>
    %c0_3 = arith.constant 0 : index
    %c0_4 = arith.constant 0 : index
    %4 = vector.load %arg3[%c0_3, %c0_4] : memref<1x384xf32, #tpu.memory_space<vmem>>, vector<1x384xf32>
    %5 = vector.broadcast %4 : vector<1x384xf32> to vector<16x384xf32>
    %6 = arith.addf %3, %5 : vector<16x384xf32>
    %7 = vector.extract_strided_slice %6 {offsets = [0, 0], sizes = [16, 128], strides = [1, 1]} : vector<16x384xf32> to vector<16x128xf32>
    %8 = vector.shape_cast %7 : vector<16x128xf32> to vector<2x8x128xf32>
    %9 = vector.extract_strided_slice %6 {offsets = [0, 128], sizes = [16, 128], strides = [1, 1]} : vector<16x384xf32> to vector<16x128xf32>
    %10 = vector.shape_cast %9 : vector<16x128xf32> to vector<2x8x128xf32>
    %11 = vector.extract_strided_slice %6 {offsets = [0, 256], sizes = [16, 128], strides = [1, 1]} : vector<16x384xf32> to vector<16x128xf32>
    %12 = vector.shape_cast %11 : vector<16x128xf32> to vector<2x8x128xf32>
    %13 = arith.truncf %8 : vector<2x8x128xf32> to vector<2x8x128xbf16>
    %14 = arith.truncf %10 : vector<2x8x128xf32> to vector<2x8x128xbf16>
    "tpu.trace_start"() <{level = 10 : i32, message = "bnd,bmd->bnm"}> : () -> ()
    %cst_5 = arith.constant dense<0.000000e+00> : vector<2x8x8xf32>
    %15 = tpu.matmul %13, %14, %cst_5 {dimension_numbers = #tpu.dot_dimension_numbers<[2], [2], [1], [1], [0, 0, 0, 1, 1, 1], [0], [0]>} : vector<2x8x128xbf16>, vector<2x8x128xbf16>, vector<2x8x8xf32> -> vector<2x8x8xf32>
    "tpu.trace_stop"() : () -> ()
    %cst_6 = arith.constant dense<0xFF800000> : vector<2x8xf32>
    %16 = vector.multi_reduction <maximumf>, %15, %cst_6 [2] : vector<2x8x8xf32> to vector<2x8xf32>
    %17 = vector.shape_cast %16 : vector<2x8xf32> to vector<2x8x1xf32>
    %18 = vector.broadcast %17 : vector<2x8x1xf32> to vector<2x8x8xf32>
    %19 = arith.subf %15, %18 : vector<2x8x8xf32>
    %20 = math.exp %19 : vector<2x8x8xf32>
    %cst_7 = arith.constant dense<0.000000e+00> : vector<2x8xf32>
    %21 = vector.multi_reduction <add>, %20, %cst_7 [2] : vector<2x8x8xf32> to vector<2x8xf32>
    %22 = vector.shape_cast %21 : vector<2x8xf32> to vector<2x8x1xf32>
    %23 = tpu.reciprocal %22 {approx = true} : vector<2x8x1xf32> -> vector<2x8x1xf32>
    %24 = vector.broadcast %23 : vector<2x8x1xf32> to vector<2x8x8xf32>
    %25 = arith.mulf %20, %24 : vector<2x8x8xf32>
    %26 = arith.truncf %25 : vector<2x8x8xf32> to vector<2x8x8xbf16>
    %27 = arith.truncf %12 : vector<2x8x128xf32> to vector<2x8x128xbf16>
    "tpu.trace_start"() <{level = 10 : i32, message = "bnm,bmd->bnd"}> : () -> ()
    %cst_8 = arith.constant dense<0.000000e+00> : vector<2x8x128xf32>
    %28 = tpu.matmul %26, %27, %cst_8 {dimension_numbers = #tpu.dot_dimension_numbers<[2], [1], [1], [2], [0, 0, 0, 1, 1, 2], [0], [0]>} : vector<2x8x8xbf16>, vector<2x8x128xbf16>, vector<2x8x128xf32> -> vector<2x8x128xf32>
    "tpu.trace_stop"() : () -> ()
    %29 = arith.addf %8, %28 : vector<2x8x128xf32>
    %30 = vector.shape_cast %29 : vector<2x8x128xf32> to vector<16x128xf32>
    %c0_9 = arith.constant 0 : index
    %c0_10 = arith.constant 0 : index
    %31 = vector.load %arg4[%c0_9, %c0_10] : memref<1x128xf32, #tpu.memory_space<vmem>>, vector<1x128xf32>
    %c0_11 = arith.constant 0 : index
    %c0_12 = arith.constant 0 : index
    %32 = vector.load %arg5[%c0_11, %c0_12] : memref<1x128xf32, #tpu.memory_space<vmem>>, vector<1x128xf32>
    %cst_13 = arith.constant dense<0.000000e+00> : vector<16xf32>
    %33 = vector.multi_reduction <add>, %30, %cst_13 [1] : vector<16x128xf32> to vector<16xf32>
    %34 = vector.shape_cast %33 : vector<16xf32> to vector<16x1xf32>
    %cst_14 = arith.constant 1.280000e+02 : f32
    %35 = vector.broadcast %cst_14 : f32 to vector<16x1xf32>
    %36 = arith.divf %34, %35 : vector<16x1xf32>
    %37 = vector.broadcast %36 : vector<16x1xf32> to vector<16x128xf32>
    %38 = arith.subf %30, %37 : vector<16x128xf32>
    %39 = arith.mulf %38, %38 : vector<16x128xf32>
    %cst_15 = arith.constant dense<0.000000e+00> : vector<16xf32>
    %40 = vector.multi_reduction <add>, %39, %cst_15 [1] : vector<16x128xf32> to vector<16xf32>
    %41 = vector.shape_cast %40 : vector<16xf32> to vector<16x1xf32>
    %cst_16 = arith.constant 1.280000e+02 : f32
    %42 = vector.broadcast %cst_16 : f32 to vector<16x1xf32>
    %43 = arith.divf %41, %42 : vector<16x1xf32>
    %cst_17 = arith.constant 9.99999974E-6 : f32
    %44 = vector.broadcast %cst_17 : f32 to vector<16x1xf32>
    %45 = arith.addf %43, %44 : vector<16x1xf32>
    %46 = math.rsqrt %45 : vector<16x1xf32>
    %47 = vector.broadcast %46 : vector<16x1xf32> to vector<16x128xf32>
    %48 = arith.mulf %38, %47 : vector<16x128xf32>
    %49 = vector.broadcast %31 : vector<1x128xf32> to vector<16x128xf32>
    %50 = arith.mulf %48, %49 : vector<16x128xf32>
    %51 = vector.broadcast %32 : vector<1x128xf32> to vector<16x128xf32>
    %52 = arith.addf %50, %51 : vector<16x128xf32>
    %53 = arith.truncf %52 : vector<16x128xf32> to vector<16x128xbf16>
    %c0_18 = arith.constant 0 : index
    %c0_19 = arith.constant 0 : index
    %54 = vector.load %arg6[%c0_18, %c0_19] : memref<128x256xbf16, #tpu.memory_space<vmem>>, vector<128x256xbf16>
    %cst_20 = arith.constant dense<0.000000e+00> : vector<16x256xf32>
    %55 = tpu.matmul %53, %54, %cst_20 {dimension_numbers = #tpu.dot_dimension_numbers<[1], [0], [0], [1], [0, 0, 1, 1], [], []>} : vector<16x128xbf16>, vector<128x256xbf16>, vector<16x256xf32> -> vector<16x256xf32>
    %c0_21 = arith.constant 0 : index
    %c0_22 = arith.constant 0 : index
    %56 = vector.load %arg7[%c0_21, %c0_22] : memref<1x256xf32, #tpu.memory_space<vmem>>, vector<1x256xf32>
    %57 = vector.broadcast %56 : vector<1x256xf32> to vector<16x256xf32>
    %58 = arith.addf %55, %57 : vector<16x256xf32>
    %cst_23 = arith.constant 0.707106769 : f32
    %59 = vector.broadcast %cst_23 : f32 to vector<16x256xf32>
    %60 = arith.mulf %58, %59 : vector<16x256xf32>
    %61 = math.absf %60 : vector<16x256xf32>
    %cst_24 = arith.constant 4.704700e-01 : f32
    %62 = vector.broadcast %cst_24 : f32 to vector<16x256xf32>
    %63 = arith.mulf %62, %61 : vector<16x256xf32>
    %cst_25 = arith.constant 1.000000e+00 : f32
    %64 = vector.broadcast %cst_25 : f32 to vector<16x256xf32>
    %65 = arith.addf %64, %63 : vector<16x256xf32>
    %66 = tpu.reciprocal %65 {approx = true} : vector<16x256xf32> -> vector<16x256xf32>
    %cst_26 = arith.constant 0.747855603 : f32
    %67 = vector.broadcast %cst_26 : f32 to vector<16x256xf32>
    %68 = arith.mulf %67, %66 : vector<16x256xf32>
    %cst_27 = arith.constant 9.587980e-02 : f32
    %69 = vector.broadcast %cst_27 : f32 to vector<16x256xf32>
    %70 = arith.subf %68, %69 : vector<16x256xf32>
    %71 = arith.mulf %70, %66 : vector<16x256xf32>
    %cst_28 = arith.constant 0.348024189 : f32
    %72 = vector.broadcast %cst_28 : f32 to vector<16x256xf32>
    %73 = arith.addf %71, %72 : vector<16x256xf32>
    %74 = arith.mulf %73, %66 : vector<16x256xf32>
    %cst_29 = arith.constant 0.000000e+00 : f32
    %75 = vector.broadcast %cst_29 : f32 to vector<16x256xf32>
    %76 = arith.subf %75, %61 : vector<16x256xf32>
    %77 = arith.mulf %76, %61 : vector<16x256xf32>
    %78 = math.exp %77 : vector<16x256xf32>
    %79 = arith.mulf %74, %78 : vector<16x256xf32>
    %cst_30 = arith.constant 1.000000e+00 : f32
    %80 = vector.broadcast %cst_30 : f32 to vector<16x256xf32>
    %81 = arith.subf %80, %79 : vector<16x256xf32>
    %cst_31 = arith.constant 0.000000e+00 : f32
    %82 = vector.broadcast %cst_31 : f32 to vector<16x256xf32>
    %83 = arith.cmpf oge, %60, %82 : vector<16x256xf32>
    %cst_32 = arith.constant 0.000000e+00 : f32
    %84 = vector.broadcast %cst_32 : f32 to vector<16x256xf32>
    %85 = arith.subf %84, %81 : vector<16x256xf32>
    %86 = arith.select %83, %81, %85 : vector<16x256xi1>, vector<16x256xf32>
    %cst_33 = arith.constant 5.000000e-01 : f32
    %87 = vector.broadcast %cst_33 : f32 to vector<16x256xf32>
    %88 = arith.mulf %87, %58 : vector<16x256xf32>
    %cst_34 = arith.constant 1.000000e+00 : f32
    %89 = vector.broadcast %cst_34 : f32 to vector<16x256xf32>
    %90 = arith.addf %89, %86 : vector<16x256xf32>
    %91 = arith.mulf %88, %90 : vector<16x256xf32>
    %92 = arith.truncf %91 : vector<16x256xf32> to vector<16x256xbf16>
    %c0_35 = arith.constant 0 : index
    %c0_36 = arith.constant 0 : index
    %93 = vector.load %arg8[%c0_35, %c0_36] : memref<256x128xbf16, #tpu.memory_space<vmem>>, vector<256x128xbf16>
    %cst_37 = arith.constant dense<0.000000e+00> : vector<16x128xf32>
    %94 = tpu.matmul %92, %93, %cst_37 {dimension_numbers = #tpu.dot_dimension_numbers<[1], [0], [0], [1], [0, 0, 1, 1], [], []>} : vector<16x256xbf16>, vector<256x128xbf16>, vector<16x128xf32> -> vector<16x128xf32>
    %c0_38 = arith.constant 0 : index
    %c0_39 = arith.constant 0 : index
    %95 = vector.load %arg9[%c0_38, %c0_39] : memref<1x128xf32, #tpu.memory_space<vmem>>, vector<1x128xf32>
    %96 = vector.broadcast %95 : vector<1x128xf32> to vector<16x128xf32>
    %97 = arith.addf %94, %96 : vector<16x128xf32>
    %98 = arith.addf %52, %97 : vector<16x128xf32>
    %c0_40 = arith.constant 0 : index
    %c0_41 = arith.constant 0 : index
    %99 = vector.load %arg10[%c0_40, %c0_41] : memref<1x128xf32, #tpu.memory_space<vmem>>, vector<1x128xf32>
    %c0_42 = arith.constant 0 : index
    %c0_43 = arith.constant 0 : index
    %100 = vector.load %arg11[%c0_42, %c0_43] : memref<1x128xf32, #tpu.memory_space<vmem>>, vector<1x128xf32>
    %cst_44 = arith.constant dense<0.000000e+00> : vector<16xf32>
    %101 = vector.multi_reduction <add>, %98, %cst_44 [1] : vector<16x128xf32> to vector<16xf32>
    %102 = vector.shape_cast %101 : vector<16xf32> to vector<16x1xf32>
    %cst_45 = arith.constant 1.280000e+02 : f32
    %103 = vector.broadcast %cst_45 : f32 to vector<16x1xf32>
    %104 = arith.divf %102, %103 : vector<16x1xf32>
    %105 = vector.broadcast %104 : vector<16x1xf32> to vector<16x128xf32>
    %106 = arith.subf %98, %105 : vector<16x128xf32>
    %107 = arith.mulf %106, %106 : vector<16x128xf32>
    %cst_46 = arith.constant dense<0.000000e+00> : vector<16xf32>
    %108 = vector.multi_reduction <add>, %107, %cst_46 [1] : vector<16x128xf32> to vector<16xf32>
    %109 = vector.shape_cast %108 : vector<16xf32> to vector<16x1xf32>
    %cst_47 = arith.constant 1.280000e+02 : f32
    %110 = vector.broadcast %cst_47 : f32 to vector<16x1xf32>
    %111 = arith.divf %109, %110 : vector<16x1xf32>
    %cst_48 = arith.constant 9.99999974E-6 : f32
    %112 = vector.broadcast %cst_48 : f32 to vector<16x1xf32>
    %113 = arith.addf %111, %112 : vector<16x1xf32>
    %114 = math.rsqrt %113 : vector<16x1xf32>
    %115 = vector.broadcast %114 : vector<16x1xf32> to vector<16x128xf32>
    %116 = arith.mulf %106, %115 : vector<16x128xf32>
    %117 = vector.broadcast %99 : vector<1x128xf32> to vector<16x128xf32>
    %118 = arith.mulf %116, %117 : vector<16x128xf32>
    %119 = vector.broadcast %100 : vector<1x128xf32> to vector<16x128xf32>
    %120 = arith.addf %118, %119 : vector<16x128xf32>
    %c0_49 = arith.constant 0 : index
    %c0_50 = arith.constant 0 : index
    %121 = vector.load %arg12[%c0_49, %c0_50] : memref<16x128xf32, #tpu.memory_space<vmem>>, vector<16x128xf32>
    tpu.vector_store %arg12[%c0_49, %c0_50], %120 {strides = array<i32>} : memref<16x128xf32, #tpu.memory_space<vmem>>, vector<16x128xf32>,
    return
  }
  func.func @transform_0(%arg0: i32) -> (i32, i32) {
    %c0_i32 = arith.constant 0 : i32
    %c0_i32_0 = arith.constant 0 : i32
    return %arg0, %c0_i32 : i32, i32
  }
  func.func @transform_1(%arg0: i32) -> (i32, i32) {
    %c0_i32 = arith.constant 0 : i32
    %c0_i32_0 = arith.constant 0 : i32
    %c0_i32_1 = arith.constant 0 : i32
    return %c0_i32, %c0_i32_0 : i32, i32
  }
  func.func @transform_2(%arg0: i32) -> (i32, i32) {
    %c0_i32 = arith.constant 0 : i32
    %c0_i32_0 = arith.constant 0 : i32
    %c0_i32_1 = arith.constant 0 : i32
    return %c0_i32, %c0_i32_0 : i32, i32
  }
  func.func @transform_3(%arg0: i32) -> (i32, i32) {
    %c0_i32 = arith.constant 0 : i32
    %c0_i32_0 = arith.constant 0 : i32
    %c0_i32_1 = arith.constant 0 : i32
    return %c0_i32, %c0_i32_0 : i32, i32
  }
  func.func @transform_4(%arg0: i32) -> (i32, i32) {
    %c0_i32 = arith.constant 0 : i32
    %c0_i32_0 = arith.constant 0 : i32
    %c0_i32_1 = arith.constant 0 : i32
    return %c0_i32, %c0_i32_0 : i32, i32
  }
  func.func @transform_5(%arg0: i32) -> (i32, i32) {
    %c0_i32 = arith.constant 0 : i32
    %c0_i32_0 = arith.constant 0 : i32
    %c0_i32_1 = arith.constant 0 : i32
    return %c0_i32, %c0_i32_0 : i32, i32
  }
  func.func @transform_6(%arg0: i32) -> (i32, i32) {
    %c0_i32 = arith.constant 0 : i32
    %c0_i32_0 = arith.constant 0 : i32
    %c0_i32_1 = arith.constant 0 : i32
    return %c0_i32, %c0_i32_0 : i32, i32
  }
  func.func @transform_7(%arg0: i32) -> (i32, i32) {
    %c0_i32 = arith.constant 0 : i32
    %c0_i32_0 = arith.constant 0 : i32
    %c0_i32_1 = arith.constant 0 : i32
    return %c0_i32, %c0_i32_0 : i32, i32
  }
  func.func @transform_8(%arg0: i32) -> (i32, i32) {
    %c0_i32 = arith.constant 0 : i32
    %c0_i32_0 = arith.constant 0 : i32
    %c0_i32_1 = arith.constant 0 : i32
    return %c0_i32, %c0_i32_0 : i32, i32
  }
  func.func @transform_9(%arg0: i32) -> (i32, i32) {
    %c0_i32 = arith.constant 0 : i32
    %c0_i32_0 = arith.constant 0 : i32
    %c0_i32_1 = arith.constant 0 : i32
    return %c0_i32, %c0_i32_0 : i32, i32
  }
  func.func @transform_10(%arg0: i32) -> (i32, i32) {
    %c0_i32 = arith.constant 0 : i32
    %c0_i32_0 = arith.constant 0 : i32
    %c0_i32_1 = arith.constant 0 : i32
    return %c0_i32, %c0_i32_0 : i32, i32
  }
  func.func @transform_11(%arg0: i32) -> (i32, i32) {
    %c0_i32 = arith.constant 0 : i32
    %c0_i32_0 = arith.constant 0 : i32
    return %arg0, %c0_i32 : i32, i32
  }
}

</mosaic_0001>

<llo_original>
// kernel: _lambda_.1
$region0: #{_lambda_.1}
  #allocation0 [shape = 'u32[]', space=smem, size = 0x4, offset = 0x4, fixed_abs, tag = 'smem constant byte address 0x4 - core index']
  #allocation1 [shape = 'u32[144,128]{1,0:T(1,128)}', space=vmem, size = 0x12000, scoped, tag = 'internal scratch']
  %s0 = inlined_call_operand.hbm [shape: f32[64,32], index: 0, kind: input, shape index: {}]
  %s1 = inlined_call_operand.hbm [shape: bf16[32,384], index: 1, kind: input, shape index: {}]
  %s2 = inlined_call_operand.vmem [shape: f32[1,384], index: 2, kind: input, shape index: {}]
  %s3 = inlined_call_operand.vmem [shape: f32[1,128], index: 3, kind: input, shape index: {}]
  %s4 = inlined_call_operand.vmem [shape: f32[1,128], index: 4, kind: input, shape index: {}]
  %s5 = inlined_call_operand.hbm [shape: bf16[128,256], index: 5, kind: input, shape index: {}]
  %s6 = inlined_call_operand.vmem [shape: f32[1,256], index: 6, kind: input, shape index: {}]
  %s7 = inlined_call_operand.hbm [shape: bf16[256,128], index: 7, kind: input, shape index: {}]
  %s8 = inlined_call_operand.hbm [shape: f32[1,128], index: 8, kind: input, shape index: {}]
  %s9 = inlined_call_operand.vmem [shape: f32[1,128], index: 9, kind: input, shape index: {}]
  %s10 = inlined_call_operand.vmem [shape: f32[1,128], index: 10, kind: input, shape index: {}]
  %s11 = inlined_call_operand.hbm [shape: f32[64,128], index: 11, kind: output, shape index: {}]
  %s12 = sld [smem:[#allocation0]]
  $region97: #{_lambda_.1} parent=0
    _
  %s14 = ssub.s32 1, %s12
  %s15 = scalar_select 0, %s14, %s12
  $region1: #{_lambda_.1} parent=0
    #allocation2 [shape = 'u8[16384]{0}', space=vmem, size = 0x4000, scoped, tag = 'input window, operand 0']
    #allocation3 [shape = 's32[2]{0}', space=sflag, size = 0x8, scoped, tag = 'scoped memory for _lambda_.1']
    #allocation4 [shape = 's32[2]{0}', space=sflag, size = 0x8, scoped, tag = 'scoped memory for _lambda_.1']
    #allocation5 [shape = 'u8[24576]{0}', space=vmem, size = 0x6000, scoped, tag = 'input window, operand 1, single buffered']
    #allocation6 [shape = 's32[1]{0}', space=sflag, size = 0x4, scoped, tag = 'scoped memory for _lambda_.1']
    #allocation7 [shape = 'u8[65536]{0}', space=vmem, size = 0x10000, scoped, tag = 'input window, operand 5, single buffered']
    #allocation8 [shape = 'u8[65536]{0}', space=vmem, size = 0x10000, scoped, tag = 'input window, operand 7, single buffered']
    #allocation9 [shape = 's32[1]{0}', space=sflag, size = 0x4, scoped, tag = 'scoped memory for _lambda_.1']
    #allocation10 [shape = 'u8[512]{0}', space=vmem, size = 0x400, scoped, tag = 'input window, operand 8, single buffered']
    #allocation11 [shape = 'u8[16384]{0}', space=vmem, size = 0x4000, scoped, tag = 'output window, operand 0']
    %16 = vsyncpa [#allocation3], 0
    %s17 = scalar_lea.sflag [#allocation3], 1
    %18 = vsyncpa %s17, 0
    %19 = vsyncpa [#allocation6], 0
    %20 = vsyncpa [#allocation9], 0
    %21 = vsyncpa [#allocation4], 0
    %s22 = scalar_lea.sflag [#allocation4], 1
    %23 = vsyncpa %s22, 0
    loop: start=0, step=1, limit=6
    $region2: #{_lambda_.1} parent=1 // loop_pre_header
      _
    $region3: #{_lambda_.1} parent=1 // loop_header
      %s25 = sphi 0, %s29
      %p26 = scmp.ge.s32.totalorder %s25, 6
      %s35 = sphi 0, %s37
      %s38 = sphi 0, %s35
      %s39 = sphi 0, %s38
      %s55 = sphi 0, %s39
      %s59 = sphi 0, %s59
      %s61 = sphi 0, %s59
      %s62 = sphi 0, %s61
      %s76 = sphi 0, %s62
      %s80 = sphi 0, %s80
      %s82 = sphi 0, %s80
      %s83 = sphi 0, %s82
      %s97 = sphi 0, %s83
      %s101 = sphi 0, %s101
      %s103 = sphi 0, %s101
      %s104 = sphi 0, %s103
      %s118 = sphi 0, %s104
      %s122 = sphi 0, %s122
      %s124 = sphi 0, %s122
      %s125 = sphi 0, %s124
      %s139 = sphi 0, %s125
      %s143 = sphi 0, %s143
      %s145 = sphi 0, %s143
      %s146 = sphi 0, %s145
      %s160 = sphi 0, %s146
      %s164 = sphi 0, %s164
      %s166 = sphi 0, %s164
      %s167 = sphi 0, %s166
      %s181 = sphi 0, %s167
      %s185 = sphi 0, %s185
      %s187 = sphi 0, %s185
      %s188 = sphi 0, %s187
      %s202 = sphi 0, %s188
      %s206 = sphi 0, %s206
      %s208 = sphi 0, %s206
      %s209 = sphi 0, %s208
      %s223 = sphi 0, %s209
      %s227 = sphi 0, %s227
      %s229 = sphi 0, %s227
      %s230 = sphi 0, %s229
      %s244 = sphi 0, %s230
      %s248 = sphi 0, %s248
      %s250 = sphi 0, %s248
      %s251 = sphi 0, %s250
      %s265 = sphi 0, %s251
      %s271 = sphi 0, %s273
      %s274 = sphi 0, %s271
      %s275 = sphi 0, %s274
      %s291 = sphi 0, %s275
    $region4: #{_lambda_.1} parent=1 // loop_header_branch
      %28 = sbr.rel (%p26) target = $region8
    $region5: #{_lambda_.1} parent=1 // loop_body
      %s30 = ssub.s32 %s25, 1
      %s31 = ssub.s32 %s25, 2
      %s32 = sadd.s32 %s25, 1
      %s33 = ssub.s32 %s25, %s32
      %p34 = scmp.eq.s32.totalorder %s33, 0
      %s36 = sadd.s32 %s35, 1
      %s37 = scalar_select %p34, %s35, %s36
      %p40 = pneg %p34
      %p41 = scmp.eq.s32.totalorder %s25, 3
      %p42 = por %p40, %p41
      %p43 = scmp.ne.s32.totalorder %s35, %s38
      %p44 = scmp.eq.s32.totalorder %s25, 0
      %p45 = por %p43, %p44
      %p46 = scmp.ne.s32.totalorder %s35, %s38
      %p47 = scmp.eq.s32.totalorder %s30, 3
      %p48 = por %p46, %p47
      %p49 = scmp.ne.s32.totalorder %s38, %s39
      %p50 = scmp.eq.s32.totalorder %s30, 0
      %p51 = por %p49, %p50
      %p52 = scmp.ne.s32.totalorder %s38, %s39
      %p53 = scmp.eq.s32.totalorder %s31, 3
      %p54 = por %p52, %p53
      %p56 = scmp.ne.s32.totalorder %s39, %s55
      %p57 = scmp.eq.s32.totalorder %s31, 0
      %p58 = por %p56, %p57
      %s60 = sadd.s32 %s59, 1
      %p63 = scmp.eq.s32.totalorder %s25, 3
      %p64 = scmp.ne.s32.totalorder %s59, %s61
      %p65 = scmp.eq.s32.totalorder %s25, 0
      %p66 = por %p64, %p65
      %p67 = scmp.ne.s32.totalorder %s59, %s61
      %p68 = scmp.eq.s32.totalorder %s30, 3
      %p69 = por %p67, %p68
      %p70 = scmp.ne.s32.totalorder %s61, %s62
      %p71 = scmp.eq.s32.totalorder %s30, 0
      %p72 = por %p70, %p71
      %p73 = scmp.ne.s32.totalorder %s61, %s62
      %p74 = scmp.eq.s32.totalorder %s31, 3
      %p75 = por %p73, %p74
      %p77 = scmp.ne.s32.totalorder %s62, %s76
      %p78 = scmp.eq.s32.totalorder %s31, 0
      %p79 = por %p77, %p78
      %s81 = sadd.s32 %s80, 1
      %p84 = scmp.eq.s32.totalorder %s25, 3
      %p85 = scmp.ne.s32.totalorder %s80, %s82
      %p86 = scmp.eq.s32.totalorder %s25, 0
      %p87 = por %p85, %p86
      %p88 = scmp.ne.s32.totalorder %s80, %s82
      %p89 = scmp.eq.s32.totalorder %s30, 3
      %p90 = por %p88, %p89
      %p91 = scmp.ne.s32.totalorder %s82, %s83
      %p92 = scmp.eq.s32.totalorder %s30, 0
      %p93 = por %p91, %p92
      %p94 = scmp.ne.s32.totalorder %s82, %s83
      %p95 = scmp.eq.s32.totalorder %s31, 3
      %p96 = por %p94, %p95
      %p98 = scmp.ne.s32.totalorder %s83, %s97
      %p99 = scmp.eq.s32.totalorder %s31, 0
      %p100 = por %p98, %p99
      %s102 = sadd.s32 %s101, 1
      %p105 = scmp.eq.s32.totalorder %s25, 3
      %p106 = scmp.ne.s32.totalorder %s101, %s103
      %p107 = scmp.eq.s32.totalorder %s25, 0
      %p108 = por %p106, %p107
      %p109 = scmp.ne.s32.totalorder %s101, %s103
      %p110 = scmp.eq.s32.totalorder %s30, 3
      %p111 = por %p109, %p110
      %p112 = scmp.ne.s32.totalorder %s103, %s104
      %p113 = scmp.eq.s32.totalorder %s30, 0
      %p114 = por %p112, %p113
      %p115 = scmp.ne.s32.totalorder %s103, %s104
      %p116 = scmp.eq.s32.totalorder %s31, 3
      %p117 = por %p115, %p116
      %p119 = scmp.ne.s32.totalorder %s104, %s118
      %p120 = scmp.eq.s32.totalorder %s31, 0
      %p121 = por %p119, %p120
      %s123 = sadd.s32 %s122, 1
      %p126 = scmp.eq.s32.totalorder %s25, 3
      %p127 = scmp.ne.s32.totalorder %s122, %s124
      %p128 = scmp.eq.s32.totalorder %s25, 0
      %p129 = por %p127, %p128
      %p130 = scmp.ne.s32.totalorder %s122, %s124
      %p131 = scmp.eq.s32.totalorder %s30, 3
      %p132 = por %p130, %p131
      %p133 = scmp.ne.s32.totalorder %s124, %s125
      %p134 = scmp.eq.s32.totalorder %s30, 0
      %p135 = por %p133, %p134
      %p136 = scmp.ne.s32.totalorder %s124, %s125
      %p137 = scmp.eq.s32.totalorder %s31, 3
      %p138 = por %p136, %p137
      %p140 = scmp.ne.s32.totalorder %s125, %s139
      %p141 = scmp.eq.s32.totalorder %s31, 0
      %p142 = por %p140, %p141
      %s144 = sadd.s32 %s143, 1
      %p147 = scmp.eq.s32.totalorder %s25, 3
      %p148 = scmp.ne.s32.totalorder %s143, %s145
      %p149 = scmp.eq.s32.totalorder %s25, 0
      %p150 = por %p148, %p149
      %p151 = scmp.ne.s32.totalorder %s143, %s145
      %p152 = scmp.eq.s32.totalorder %s30, 3
      %p153 = por %p151, %p152
      %p154 = scmp.ne.s32.totalorder %s145, %s146
      %p155 = scmp.eq.s32.totalorder %s30, 0
      %p156 = por %p154, %p155
      %p157 = scmp.ne.s32.totalorder %s145, %s146
      %p158 = scmp.eq.s32.totalorder %s31, 3
      %p159 = por %p157, %p158
      %p161 = scmp.ne.s32.totalorder %s146, %s160
      %p162 = scmp.eq.s32.totalorder %s31, 0
      %p163 = por %p161, %p162
      %s165 = sadd.s32 %s164, 1
      %p168 = scmp.eq.s32.totalorder %s25, 3
      %p169 = scmp.ne.s32.totalorder %s164, %s166
      %p170 = scmp.eq.s32.totalorder %s25, 0
      %p171 = por %p169, %p170
      %p172 = scmp.ne.s32.totalorder %s164, %s166
      %p173 = scmp.eq.s32.totalorder %s30, 3
      %p174 = por %p172, %p173
      %p175 = scmp.ne.s32.totalorder %s166, %s167
      %p176 = scmp.eq.s32.totalorder %s30, 0
      %p177 = por %p175, %p176
      %p178 = scmp.ne.s32.totalorder %s166, %s167
      %p179 = scmp.eq.s32.totalorder %s31, 3
      %p180 = por %p178, %p179
      %p182 = scmp.ne.s32.totalorder %s167, %s181
      %p183 = scmp.eq.s32.totalorder %s31, 0
      %p184 = por %p182, %p183
      %s186 = sadd.s32 %s185, 1
      %p189 = scmp.eq.s32.totalorder %s25, 3
      %p190 = scmp.ne.s32.totalorder %s185, %s187
      %p191 = scmp.eq.s32.totalorder %s25, 0
      %p192 = por %p190, %p191
      %p193 = scmp.ne.s32.totalorder %s185, %s187
      %p194 = scmp.eq.s32.totalorder %s30, 3
      %p195 = por %p193, %p194
      %p196 = scmp.ne.s32.totalorder %s187, %s188
      %p197 = scmp.eq.s32.totalorder %s30, 0
      %p198 = por %p196, %p197
      %p199 = scmp.ne.s32.totalorder %s187, %s188
      %p200 = scmp.eq.s32.totalorder %s31, 3
      %p201 = por %p199, %p200
      %p203 = scmp.ne.s32.totalorder %s188, %s202
      %p204 = scmp.eq.s32.totalorder %s31, 0
      %p205 = por %p203, %p204
      %s207 = sadd.s32 %s206, 1
      %p210 = scmp.eq.s32.totalorder %s25, 3
      %p211 = scmp.ne.s32.totalorder %s206, %s208
      %p212 = scmp.eq.s32.totalorder %s25, 0
      %p213 = por %p211, %p212
      %p214 = scmp.ne.s32.totalorder %s206, %s208
      %p215 = scmp.eq.s32.totalorder %s30, 3
      %p216 = por %p214, %p215
      %p217 = scmp.ne.s32.totalorder %s208, %s209
      %p218 = scmp.eq.s32.totalorder %s30, 0
      %p219 = por %p217, %p218
      %p220 = scmp.ne.s32.totalorder %s208, %s209
      %p221 = scmp.eq.s32.totalorder %s31, 3
      %p222 = por %p220, %p221
      %p224 = scmp.ne.s32.totalorder %s209, %s223
      %p225 = scmp.eq.s32.totalorder %s31, 0
      %p226 = por %p224, %p225
      %s228 = sadd.s32 %s227, 1
      %p231 = scmp.eq.s32.totalorder %s25, 3
      %p232 = scmp.ne.s32.totalorder %s227, %s229
      %p233 = scmp.eq.s32.totalorder %s25, 0
      %p234 = por %p232, %p233
      %p235 = scmp.ne.s32.totalorder %s227, %s229
      %p236 = scmp.eq.s32.totalorder %s30, 3
      %p237 = por %p235, %p236
      %p238 = scmp.ne.s32.totalorder %s229, %s230
      %p239 = scmp.eq.s32.totalorder %s30, 0
      %p240 = por %p238, %p239
      %p241 = scmp.ne.s32.totalorder %s229, %s230
      %p242 = scmp.eq.s32.totalorder %s31, 3
      %p243 = por %p241, %p242
      %p245 = scmp.ne.s32.totalorder %s230, %s244
      %p246 = scmp.eq.s32.totalorder %s31, 0
      %p247 = por %p245, %p246
      %s249 = sadd.s32 %s248, 1
      %p252 = scmp.eq.s32.totalorder %s25, 3
      %p253 = scmp.ne.s32.totalorder %s248, %s250
      %p254 = scmp.eq.s32.totalorder %s25, 0
      %p255 = por %p253, %p254
      %p256 = scmp.ne.s32.totalorder %s248, %s250
      %p257 = scmp.eq.s32.totalorder %s30, 3
      %p258 = por %p256, %p257
      %p259 = scmp.ne.s32.totalorder %s250, %s251
      %p260 = scmp.eq.s32.totalorder %s30, 0
      %p261 = por %p259, %p260
      %p262 = scmp.ne.s32.totalorder %s250, %s251
      %p263 = scmp.eq.s32.totalorder %s31, 3
      %p264 = por %p262, %p263
      %p266 = scmp.ne.s32.totalorder %s251, %s265
      %p267 = scmp.eq.s32.totalorder %s31, 0
      %p268 = por %p266, %p267
      %s269 = ssub.s32 %s25, %s32
      %p270 = scmp.eq.s32.totalorder %s269, 0
      %s272 = sadd.s32 %s271, 1
      %s273 = scalar_select %p270, %s271, %s272
      %p276 = pneg %p270
      %p277 = scmp.eq.s32.totalorder %s25, 3
      %p278 = por %p276, %p277
      %p279 = scmp.ne.s32.totalorder %s271, %s274
      %p280 = scmp.eq.s32.totalorder %s25, 0
      %p281 = por %p279, %p280
      %p282 = scmp.ne.s32.totalorder %s271, %s274
      %p283 = scmp.eq.s32.totalorder %s30, 3
      %p284 = por %p282, %p283
      %p285 = scmp.ne.s32.totalorder %s274, %s275
      %p286 = scmp.eq.s32.totalorder %s30, 0
      %p287 = por %p285, %p286
      %p288 = scmp.ne.s32.totalorder %s274, %s275
      %p289 = scmp.eq.s32.totalorder %s31, 3
      %p290 = por %p288, %p289
      %p292 = scmp.ne.s32.totalorder %s275, %s291
      %p293 = scmp.eq.s32.totalorder %s31, 0
      %p294 = por %p292, %p293
      %p295 = scmp.le.s32.totalorder 1, %s25
      %p296 = scmp.lt.s32.totalorder %s25, 5
      %p297 = pnand %p295, %p296
      %p298 = pneg %p297
      // Predicated region
      $region9: #{_lambda_.1} parent=5 // pred_check
        _
      $region10: #{_lambda_.1} parent=5 // pred_check_branch
        %300 = sbr.rel (%p297) target = $region12
      $region11: #{_lambda_.1} parent=5 // pred_region
        %s301 = ssub.s32 %s25, 1
        // Predicated region
        $region13: #{_lambda_.1} parent=11 // pred_check
          %p302 = pneg %p72
        $region14: #{_lambda_.1} parent=11 // pred_check_branch
          %304 = sbr.rel (%p302) target = $region16
        $region15: #{_lambda_.1} parent=11 // pred_region
          %s306 = ssub.s32 768, 768
          %307 = vsyncadd [#allocation6], %s306
          %s308 = sshll.u32 [#allocation5], 4
          %s309 = int_to_ptr.vmem [resolvable:$true] %s308
          %314 = dma.hbm_to_vmem [thread:$0]  %s1, 768, %s309, [#allocation6], 192, 192, 12
        $region16: #{_lambda_.1} parent=11 // pred_fallthru
          _
        // Predicated region
        $region17: #{_lambda_.1} parent=11 // pred_check
          %p315 = pneg %p93
        $region18: #{_lambda_.1} parent=11 // pred_check_branch
          %317 = sbr.rel (%p315) target = $region20
        $region19: #{_lambda_.1} parent=11 // pred_region
          _
        $region20: #{_lambda_.1} parent=11 // pred_fallthru
          _
        // Predicated region
        $region21: #{_lambda_.1} parent=11 // pred_check
          %p318 = pneg %p114
        $region22: #{_lambda_.1} parent=11 // pred_check_branch
          %320 = sbr.rel (%p318) target = $region24
        $region23: #{_lambda_.1} parent=11 // pred_region
          _
        $region24: #{_lambda_.1} parent=11 // pred_fallthru
          _
        // Predicated region
        $region25: #{_lambda_.1} parent=11 // pred_check
          %p321 = pneg %p135
        $region26: #{_lambda_.1} parent=11 // pred_check_branch
          %323 = sbr.rel (%p321) target = $region28
        $region27: #{_lambda_.1} parent=11 // pred_region
          _
        $region28: #{_lambda_.1} parent=11 // pred_fallthru
          _
        // Predicated region
        $region29: #{_lambda_.1} parent=11 // pred_check
          %p324 = pneg %p156
        $region30: #{_lambda_.1} parent=11 // pred_check_branch
          %326 = sbr.rel (%p324) target = $region32
        $region31: #{_lambda_.1} parent=11 // pred_region
          %s328 = ssub.s32 2048, 2048
          %329 = vsyncadd [#allocation6], %s328
          %s330 = sshll.u32 [#allocation7], 4
          %s331 = int_to_ptr.vmem [resolvable:$true] %s330
          %336 = dma.hbm_to_vmem [thread:$0]  %s5, 2048, %s331, [#allocation6], 128, 128, 8
        $region32: #{_lambda_.1} parent=11 // pred_fallthru
          _
        // Predicated region
        $region33: #{_lambda_.1} parent=11 // pred_check
          %p337 = pneg %p177
        $region34: #{_lambda_.1} parent=11 // pred_check_branch
          %339 = sbr.rel (%p337) target = $region36
        $region35: #{_lambda_.1} parent=11 // pred_region
          _
        $region36: #{_lambda_.1} parent=11 // pred_fallthru
          _
        // Predicated region
        $region37: #{_lambda_.1} parent=11 // pred_check
          %p340 = pneg %p198
        $region38: #{_lambda_.1} parent=11 // pred_check_branch
          %342 = sbr.rel (%p340) target = $region40
        $region39: #{_lambda_.1} parent=11 // pred_region
          %s344 = ssub.s32 2048, 2048
          %345 = vsyncadd [#allocation9], %s344
          %s346 = sshll.u32 [#allocation8], 4
          %s347 = int_to_ptr.vmem [resolvable:$true] %s346
          %352 = dma.hbm_to_vmem [thread:$0]  %s7, 2048, %s347, [#allocation9], 64, 64, 4
        $region40: #{_lambda_.1} parent=11 // pred_fallthru
          _
        // Predicated region
        $region41: #{_lambda_.1} parent=11 // pred_check
          %p353 = pneg %p219
        $region42: #{_lambda_.1} parent=11 // pred_check_branch
          %355 = sbr.rel (%p353) target = $region44
        $region43: #{_lambda_.1} parent=11 // pred_region
          %s357 = ssub.s32 16, 16
          %358 = vsyncadd [#allocation9], %s357
          %s360 = sshll.u32 [#allocation10], 4
          %s361 = int_to_ptr.vmem [resolvable:$true] %s360
          %363 = dma.hbm_to_vmem [thread:$0]  %s8, 16, %s361, [#allocation9]
        $region44: #{_lambda_.1} parent=11 // pred_fallthru
          _
        // Predicated region
        $region45: #{_lambda_.1} parent=11 // pred_check
          %p364 = pneg %p240
        $region46: #{_lambda_.1} parent=11 // pred_check_branch
          %366 = sbr.rel (%p364) target = $region48
        $region47: #{_lambda_.1} parent=11 // pred_region
          _
        $region48: #{_lambda_.1} parent=11 // pred_fallthru
          _
        // Predicated region
        $region49: #{_lambda_.1} parent=11 // pred_check
          %p367 = pneg %p261
        $region50: #{_lambda_.1} parent=11 // pred_check_branch
          %369 = sbr.rel (%p367) target = $region52
        $region51: #{_lambda_.1} parent=11 // pred_region
          _
        $region52: #{_lambda_.1} parent=11 // pred_fallthru
          _
      $region12: #{_lambda_.1} parent=5 // pred_fallthru
        _
      %p370 = scmp.lt.s32.totalorder %s25, 4
      // Predicated region
      $region53: #{_lambda_.1} parent=5 // pred_check
        %p371 = pneg %p370
      $region54: #{_lambda_.1} parent=5 // pred_check_branch
        %373 = sbr.rel (%p371) target = $region56
      $region55: #{_lambda_.1} parent=5 // pred_region
        // Predicated region
        $region57: #{_lambda_.1} parent=55 // pred_check
          %p374 = pneg %p45
        $region58: #{_lambda_.1} parent=55 // pred_check_branch
          %376 = sbr.rel (%p374) target = $region60
        $region59: #{_lambda_.1} parent=55 // pred_region
          %s377 = sand.u32 %s35, 1
          %s378 = scalar_lea.sflag [#allocation3], %s377
          %s379 = sand.u32 %s35, 1
          %s380 = smul.addr %s379, 16
          %s381 = scalar_lea.vmem [#allocation2], %s380
          %s382 = smul.u32 2, %s25
          %s384 = ssub.s32 256, 256
          %385 = vsyncadd %s378, %s384
          %s386 = smul.addr %s382, 128
          %s387 = scalar_lea.hbm %s0, %s386
          %s388 = sshll.u32 %s381, 4
          %s389 = int_to_ptr.vmem [resolvable:$true] %s388
          %394 = dma.hbm_to_vmem [thread:$0]  %s387, 256, %s389, %s378, 128, 128, 8
        $region60: #{_lambda_.1} parent=55 // pred_fallthru
          _
      $region56: #{_lambda_.1} parent=5 // pred_fallthru
        _
      %p395 = scmp.le.s32.totalorder 1, %s25
      %p396 = scmp.lt.s32.totalorder %s25, 5
      %p397 = pnand %p395, %p396
      %p398 = pneg %p397
      // Predicated region
      $region61: #{_lambda_.1} parent=5 // pred_check
        _
      $region62: #{_lambda_.1} parent=5 // pred_check_branch
        %400 = sbr.rel (%p397) target = $region64
      $region63: #{_lambda_.1} parent=5 // pred_region
        %s401 = ssub.s32 %s25, 1
        %s402 = sand.u32 %s38, 1
        %s403 = scalar_lea.sflag [#allocation3], %s402
        %s404 = sand.u32 %s38, 1
        %s405 = smul.addr %s404, 16
        %s406 = scalar_lea.vmem [#allocation2], %s405
        // Predicated region
        $region65: #{_lambda_.1} parent=63 // pred_check
          %p407 = pneg %p51
        $region66: #{_lambda_.1} parent=63 // pred_check_branch
          %409 = sbr.rel (%p407) target = $region68
        $region67: #{_lambda_.1} parent=63 // pred_region
          %410 = dma.done %s403, 256
        $region68: #{_lambda_.1} parent=63 // pred_fallthru
          _
        // Predicated region
        $region69: #{_lambda_.1} parent=63 // pred_check
          %p411 = pneg %p72
        $region70: #{_lambda_.1} parent=63 // pred_check_branch
          %413 = sbr.rel (%p411) target = $region72
        $region71: #{_lambda_.1} parent=63 // pred_region
          %414 = dma.done [#allocation6], 768
        $region72: #{_lambda_.1} parent=63 // pred_fallthru
          _
        // Predicated region
        $region73: #{_lambda_.1} parent=63 // pred_check
          %p415 = pneg %p156
        $region74: #{_lambda_.1} parent=63 // pred_check_branch
          %417 = sbr.rel (%p415) target = $region76
        $region75: #{_lambda_.1} parent=63 // pred_region
          %418 = dma.done [#allocation6], 2048
        $region76: #{_lambda_.1} parent=63 // pred_fallthru
          _
        // Predicated region
        $region77: #{_lambda_.1} parent=63 // pred_check
          %p419 = pneg %p198
        $region78: #{_lambda_.1} parent=63 // pred_check_branch
          %421 = sbr.rel (%p419) target = $region80
        $region79: #{_lambda_.1} parent=63 // pred_region
          %422 = dma.done [#allocation9], 2048
        $region80: #{_lambda_.1} parent=63 // pred_fallthru
          _
        // Predicated region
        $region81: #{_lambda_.1} parent=63 // pred_check
          %p423 = pneg %p219
        $region82: #{_lambda_.1} parent=63 // pred_check_branch
          %425 = sbr.rel (%p423) target = $region84
        $region83: #{_lambda_.1} parent=63 // pred_region
          %426 = dma.done [#allocation9], 16
        $region84: #{_lambda_.1} parent=63 // pred_fallthru
          _
        %s427 = sand.u32 %s38, 1
        %s428 = scalar_lea.sflag [#allocation3], %s427
        %s429 = sand.u32 %s38, 1
        %s430 = smul.addr %s429, 16
        %s431 = scalar_lea.vmem [#allocation2], %s430
        %p432 = pneg %p51
        %p433 = pneg %p48
        %p434 = pneg %p72
        %p435 = pneg %p69
        %p436 = pneg %p93
        %p437 = pneg %p90
        %p438 = pneg %p114
        %p439 = pneg %p111
        %p440 = pneg %p135
        %p441 = pneg %p132
        %p442 = pneg %p156
        %p443 = pneg %p153
        %p444 = pneg %p177
        %p445 = pneg %p174
        %p446 = pneg %p198
        %p447 = pneg %p195
        %p448 = pneg %p219
        %p449 = pneg %p216
        %p450 = pneg %p240
        %p451 = pneg %p237
        %p452 = pneg %p261
        %p453 = pneg %p258
        %p454 = pneg %p287
        %p455 = pneg %p284
        %s456 = sand.u32 %s274, 1
        %s457 = scalar_lea.sflag [#allocation4], %s456
        %s458 = sand.u32 %s274, 1
        %s459 = smul.addr %s458, 16
        %s460 = scalar_lea.vmem [#allocation11], %s459
        %s461 = smul.u32 2, %s30
        %s462 = smul.u32 2, %s30
        %v464 = vld [vmem:[%s406] sm:$0xff]
        %v465 = vld [vmem:[%s406 + $0x8] sm:$0xff]
        %v466 = vpack.c.bf16 %v465, %v464
        %v467 = vld [vmem:[#allocation5] sm:$0xff]
        %v468 = vld [vmem:[#allocation5 + $0x8] sm:$0xf]
        %v469 = vld [vmem:[#allocation5 + $0xc] sm:$0xff]
        %v470 = vld [vmem:[#allocation5 + $0x14] sm:$0xf]
        %v471 = vld [vmem:[#allocation5 + $0x18] sm:$0xff]
        %v472 = vld [vmem:[#allocation5 + $0x20] sm:$0xf]
        %v473 = vld [vmem:[#allocation5 + $0x24] sm:$0xff]
        %v474 = vld [vmem:[#allocation5 + $0x2c] sm:$0xf]
        %v475 = vld [vmem:[%s2] sm:$0x7]
        %v477 = vlaneseq
        %v478 = vshrl.u32 %v477, 7
        %v479 = vsub.s32 0, %v478
        %v480 = vrot.slane %v475, %v479
        %v481 = vlaneseq
        %v482 = vshrl.u32 %v481, 7
        %v483 = vsub.s32 1, %v482
        %v484 = vrot.slane %v475, %v483
        %v485 = vlaneseq
        %v486 = vshrl.u32 %v485, 7
        %v487 = vsub.s32 2, %v486
        %v488 = vrot.slane %v475, %v487
        %v500 = vunpack.c.l.b16 %v467
        %v501 = vunpack.c.h.b16 %v467
        %v502 = vunpack.c.l.b16 %v468
        %v503 = vunpack.c.l.b16 %v469
        %v504 = vunpack.c.h.b16 %v469
        %v505 = vunpack.c.l.b16 %v470
        %v506 = vunpack.c.l.b16 %v471
        %v507 = vunpack.c.h.b16 %v471
        %v508 = vunpack.c.l.b16 %v472
        %v509 = vunpack.c.l.b16 %v473
        %v510 = vunpack.c.h.b16 %v473
        %v511 = vunpack.c.l.b16 %v474
        %v512 = vpack.c.b16 %v503, %v500
        %v513 = vpack.c.b16 %v504, %v501
        %v514 = vpack.c.b16 %v505, %v502
        %v515 = vpack.c.b16 %v509, %v506
        %v516 = vpack.c.b16 %v510, %v507
        %v517 = vpack.c.b16 %v511, %v508
        %vm524 = vcmask 261120
        %v526 = vsel %vm524, %v466, 0
        %528 = vmatprep.subr.bf16.mxu0 0
        %529 = vmatpush1.bf16.msra.mxu0 0
        %530 = vmatprep.subr.bf16.mxu0 0
        %531 = vmatpush1.bf16.msra.mxu0 0
        %532 = vmatprep.subr.bf16.mxu0 0
        %533 = vmatpush1.bf16.msra.mxu0 0
        %534 = vmatprep.subr.bf16.mxu0 0
        %535 = vmatpush1.bf16.msra.mxu0 0
        %536 = vmatprep.subr.bf16.mxu0 0
        %537 = vmatpush1.bf16.msra.mxu0 0
        %538 = vmatprep.subr.bf16.mxu0 0
        %539 = vmatpush1.bf16.msra.mxu0 0
        %540 = vmatprep.subr.bf16.mxu0 %v516
        %541 = vmatpush1.bf16.msra.mxu0 %v515
        %542 = vmatprep.subr.bf16.mxu0 %v513
        %543 = vmatpush1.bf16.msra.mxu0 %v512
        %544 = vmatprep.subr.bf16.mxu0 0
        %545 = vmatpush2.bf16.msra.mxu0 0
        %546 = vmatprep.subr.bf16.mxu0 0
        %547 = vmatpush2.bf16.msra.mxu0 0
        %548 = vmatprep.subr.bf16.mxu0 0
        %549 = vmatpush2.bf16.msra.mxu0 0
        %550 = vmatprep.subr.bf16.mxu0 0
        %551 = vmatpush2.bf16.msra.mxu0 0
        %552 = vmatprep.subr.bf16.mxu0 0
        %553 = vmatpush2.bf16.msra.mxu0 0
        %554 = vmatprep.subr.bf16.mxu0 0
        %555 = vmatpush2.bf16.msra.mxu0 0
        %556 = vmatprep.subr.bf16.mxu0 0
        %557 = vmatpush2.bf16.msra.mxu0 0
        %558 = vmatprep.subr.bf16.mxu0 0
        %559 = vmatpush2.bf16.msra.mxu0 0
        %560 = vmatprep.mubr.bf16.mxu0 0
        %561 = vmatmul.mubr.bf16.gmra.mxu0 %v526
        %v562 = vpop.f32.mrf.mxu0
        %v563 = vadd.f32 %v480, %v562
        %v564 = vpop.f32.mrf.mxu0
        %v565 = vadd.f32 %v484, %v564
        %v566 = vpop.f32.mrf.mxu0
        %v567 = vadd.f32 %v480, %v566
        %v568 = vpop.f32.mrf.mxu0
        %v569 = vadd.f32 %v484, %v568
        %570 = vdwg.mxu0
        %571 = vmatprep.subr.bf16.mxu0 0
        %572 = vmatpush1.bf16.msra.mxu0 0
        %573 = vmatprep.subr.bf16.mxu0 0
        %574 = vmatpush1.bf16.msra.mxu0 0
        %575 = vmatprep.subr.bf16.mxu0 0
        %576 = vmatpush1.bf16.msra.mxu0 0
        %577 = vmatprep.subr.bf16.mxu0 0
        %578 = vmatpush1.bf16.msra.mxu0 0
        %579 = vmatprep.subr.bf16.mxu0 0
        %580 = vmatpush1.bf16.msra.mxu0 0
        %581 = vmatprep.subr.bf16.mxu0 0
        %582 = vmatpush1.bf16.msra.mxu0 0
        %583 = vmatprep.subr.bf16.mxu0 0
        %584 = vmatpush1.bf16.msra.mxu0 %v517
        %585 = vmatprep.subr.bf16.mxu0 0
        %586 = vmatpush1.bf16.msra.mxu0 %v514
        %587 = vmatprep.subr.bf16.mxu0 0
        %588 = vmatpush2.bf16.msra.mxu0 0
        %589 = vmatprep.subr.bf16.mxu0 0
        %590 = vmatpush2.bf16.msra.mxu0 0
        %591 = vmatprep.subr.bf16.mxu0 0
        %592 = vmatpush2.bf16.msra.mxu0 0
        %593 = vmatprep.subr.bf16.mxu0 0
        %594 = vmatpush2.bf16.msra.mxu0 0
        %595 = vmatprep.subr.bf16.mxu0 0
        %596 = vmatpush2.bf16.msra.mxu0 0
        %597 = vmatprep.subr.bf16.mxu0 0
        %598 = vmatpush2.bf16.msra.mxu0 0
        %599 = vmatprep.subr.bf16.mxu0 0
        %600 = vmatpush2.bf16.msra.mxu0 0
        %601 = vmatprep.subr.bf16.mxu0 0
        %602 = vmatpush2.bf16.msra.mxu0 0
        %603 = vmatprep.mubr.bf16.mxu0 0
        %604 = vmatmul.mubr.bf16.gmra.mxu0 %v526
        %v605 = vpop.f32.mrf.mxu0
        %v606 = vadd.f32 %v488, %v605
        %v607 = vpop.f32.mrf.mxu0
        %v608 = vpop.f32.mrf.mxu0
        %v609 = vadd.f32 %v488, %v608
        %v610 = vpop.f32.mrf.mxu0
        %611 = vdwg.mxu0
        %v612 = vpack.c.bf16 %v563, %v563
        %v613 = vpack.c.bf16 %v567, %v567
        %v614 = vpack.c.bf16 %v565, %v565
        %v615 = vpack.c.bf16 %v569, %v569
        %616 = vmatprep.subr.bf16.mxu0 0
        %617 = vmatpush1.bf16.xpose.msra.mxu0 0
        %618 = vmatprep.subr.bf16.mxu0 0
        %619 = vmatpush1.bf16.xpose.msra.mxu0 0
        %620 = vmatprep.subr.bf16.mxu0 0
        %621 = vmatpush1.bf16.xpose.msra.mxu0 0
        %622 = vmatprep.subr.bf16.mxu0 0
        %623 = vmatpush1.bf16.xpose.msra.mxu0 0
        %624 = vmatprep.subr.bf16.mxu0 0
        %625 = vmatpush1.bf16.xpose.msra.mxu0 0
        %626 = vmatprep.subr.bf16.mxu0 0
        %627 = vmatpush1.bf16.xpose.msra.mxu0 0
        %628 = vmatprep.subr.bf16.mxu0 0
        %629 = vmatpush1.bf16.xpose.msra.mxu0 0
        %630 = vmatprep.subr.bf16.mxu0 0
        %631 = vmatpush1.bf16.xpose.msra.mxu0 %v614
        %632 = vmatprep.subr.bf16.mxu0 0
        %633 = vmatpush2.bf16.xpose.msra.mxu0 0
        %634 = vmatprep.subr.bf16.mxu0 0
        %635 = vmatpush2.bf16.xpose.msra.mxu0 0
        %636 = vmatprep.subr.bf16.mxu0 0
        %637 = vmatpush2.bf16.xpose.msra.mxu0 0
        %638 = vmatprep.subr.bf16.mxu0 0
        %639 = vmatpush2.bf16.xpose.msra.mxu0 0
        %640 = vmatprep.subr.bf16.mxu0 0
        %641 = vmatpush2.bf16.xpose.msra.mxu0 0
        %642 = vmatprep.subr.bf16.mxu0 0
        %643 = vmatpush2.bf16.xpose.msra.mxu0 0
        %644 = vmatprep.subr.bf16.mxu0 0
        %645 = vmatpush2.bf16.xpose.msra.mxu0 0
        %646 = vmatprep.subr.bf16.mxu0 0
        %647 = vmatpush2.bf16.xpose.msra.mxu0 0
        %648 = vmatprep.mubr.bf16.mxu0 0
        %649 = vmatmul.mubr.bf16.gmra.mxu0 %v612
        %v650 = vpop.f32.mrf.mxu0
        %v651 = vadd.f32 0.0, %v650
        %v652 = vpop.f32.mrf.mxu0
        %v653 = vpop.f32.mrf.mxu0
        %v654 = vpop.f32.mrf.mxu0
        %655 = vdwg.mxu0
        %656 = vmatprep.subr.bf16.mxu0 0
        %657 = vmatpush1.bf16.xpose.msra.mxu0 0
        %658 = vmatprep.subr.bf16.mxu0 0
        %659 = vmatpush1.bf16.xpose.msra.mxu0 0
        %660 = vmatprep.subr.bf16.mxu0 0
        %661 = vmatpush1.bf16.xpose.msra.mxu0 0
        %662 = vmatprep.subr.bf16.mxu0 0
        %663 = vmatpush1.bf16.xpose.msra.mxu0 0
        %664 = vmatprep.subr.bf16.mxu0 0
        %665 = vmatpush1.bf16.xpose.msra.mxu0 0
        %666 = vmatprep.subr.bf16.mxu0 0
        %667 = vmatpush1.bf16.xpose.msra.mxu0 0
        %668 = vmatprep.subr.bf16.mxu0 0
        %669 = vmatpush1.bf16.xpose.msra.mxu0 0
        %670 = vmatprep.subr.bf16.mxu0 0
        %671 = vmatpush1.bf16.xpose.msra.mxu0 %v615
        %672 = vmatprep.subr.bf16.mxu0 0
        %673 = vmatpush2.bf16.xpose.msra.mxu0 0
        %674 = vmatprep.subr.bf16.mxu0 0
        %675 = vmatpush2.bf16.xpose.msra.mxu0 0
        %676 = vmatprep.subr.bf16.mxu0 0
        %677 = vmatpush2.bf16.xpose.msra.mxu0 0
        %678 = vmatprep.subr.bf16.mxu0 0
        %679 = vmatpush2.bf16.xpose.msra.mxu0 0
        %680 = vmatprep.subr.bf16.mxu0 0
        %681 = vmatpush2.bf16.xpose.msra.mxu0 0
        %682 = vmatprep.subr.bf16.mxu0 0
        %683 = vmatpush2.bf16.xpose.msra.mxu0 0
        %684 = vmatprep.subr.bf16.mxu0 0
        %685 = vmatpush2.bf16.xpose.msra.mxu0 0
        %686 = vmatprep.subr.bf16.mxu0 0
        %687 = vmatpush2.bf16.xpose.msra.mxu0 0
        %688 = vmatprep.mubr.bf16.mxu0 0
        %689 = vmatmul.mubr.bf16.gmra.mxu0 %v613
        %v690 = vpop.f32.mrf.mxu0
        %v691 = vadd.f32 0.0, %v690
        %v692 = vpop.f32.mrf.mxu0
        %v693 = vpop.f32.mrf.mxu0
        %v694 = vpop.f32.mrf.mxu0
        %695 = vdwg.mxu0
        %vm696 = vcmask 64512
        %v697 = vsel %vm696, %v651, -inf
        %698 = vmax.xlane.f32.xlu0 %v697
        %v699 = vpop.xlane.xlu0 %698
        %v700 = vsel %vm696, %v691, -inf
        %701 = vmax.xlane.f32.xlu0 %v700
        %v702 = vpop.xlane.xlu0 %701
        %v703 = vsub.f32 %v651, %v699
        %v704 = vsub.f32 %v691, %v702
        %v705 = vmul.f32 %v703, 1.442695
        %v706 = vpow.pop %v705
        %v707 = vmul.f32 %v704, 1.442695
        %v708 = vpow.pop %v707
        %v709 = vsel %vm696, %v706, 0.0
        %710 = vadd.xlane.f32.xlu0 %v709
        %v711 = vpop.xlane.xlu0 %710
        %v712 = vsel %vm696, %v708, 0.0
        %713 = vadd.xlane.f32.xlu0 %v712
        %v714 = vpop.xlane.xlu0 %713
        %v715 = vrcp.pop %v711
        %v716 = vrcp.pop %v714
        %v717 = vmul.f32 %v706, %v715
        %v718 = vmul.f32 %v708, %v716
        %v719 = vpack.c.bf16 %v717, %v717
        %v720 = vpack.c.bf16 %v718, %v718
        %v721 = vpack.c.bf16 %v606, %v606
        %v722 = vpack.c.bf16 %v609, %v609
        %v724 = vsel %vm696, %v719, 0
        %vm726 = vcmask 1043456
        %v728 = vsel %vm726, %v721, 0
        %730 = vmatprep.subr.bf16.mxu0 0
        %731 = vmatpush1.bf16.msra.mxu0 0
        %732 = vmatprep.subr.bf16.mxu0 0
        %733 = vmatpush1.bf16.msra.mxu0 0
        %734 = vmatprep.subr.bf16.mxu0 0
        %735 = vmatpush1.bf16.msra.mxu0 0
        %736 = vmatprep.subr.bf16.mxu0 0
        %737 = vmatpush1.bf16.msra.mxu0 0
        %738 = vmatprep.subr.bf16.mxu0 0
        %739 = vmatpush1.bf16.msra.mxu0 0
        %740 = vmatprep.subr.bf16.mxu0 0
        %741 = vmatpush1.bf16.msra.mxu0 0
        %742 = vmatprep.subr.bf16.mxu0 0
        %743 = vmatpush1.bf16.msra.mxu0 0
        %744 = vmatprep.subr.bf16.mxu0 0
        %745 = vmatpush1.bf16.msra.mxu0 %v728
        %746 = vmatprep.subr.bf16.mxu0 0
        %747 = vmatpush2.bf16.msra.mxu0 0
        %748 = vmatprep.subr.bf16.mxu0 0
        %749 = vmatpush2.bf16.msra.mxu0 0
        %750 = vmatprep.subr.bf16.mxu0 0
        %751 = vmatpush2.bf16.msra.mxu0 0
        %752 = vmatprep.subr.bf16.mxu0 0
        %753 = vmatpush2.bf16.msra.mxu0 0
        %754 = vmatprep.subr.bf16.mxu0 0
        %755 = vmatpush2.bf16.msra.mxu0 0
        %756 = vmatprep.subr.bf16.mxu0 0
        %757 = vmatpush2.bf16.msra.mxu0 0
        %758 = vmatprep.subr.bf16.mxu0 0
        %759 = vmatpush2.bf16.msra.mxu0 0
        %760 = vmatprep.subr.bf16.mxu0 0
        %761 = vmatpush2.bf16.msra.mxu0 0
        %762 = vmatprep.mubr.bf16.mxu0 0
        %763 = vmatmul.mubr.bf16.gmra.mxu0 %v724
        %v764 = vpop.f32.mrf.mxu0
        %v765 = vadd.f32 0.0, %v764
        %v766 = vpop.f32.mrf.mxu0
        %v767 = vpop.f32.mrf.mxu0
        %v768 = vpop.f32.mrf.mxu0
        %769 = vdwg.mxu0
        %v771 = vsel %vm696, %v720, 0
        %v774 = vsel %vm726, %v722, 0
        %776 = vmatprep.subr.bf16.mxu0 0
        %777 = vmatpush1.bf16.msra.mxu0 0
        %778 = vmatprep.subr.bf16.mxu0 0
        %779 = vmatpush1.bf16.msra.mxu0 0
        %780 = vmatprep.subr.bf16.mxu0 0
        %781 = vmatpush1.bf16.msra.mxu0 0
        %782 = vmatprep.subr.bf16.mxu0 0
        %783 = vmatpush1.bf16.msra.mxu0 0
        %784 = vmatprep.subr.bf16.mxu0 0
        %785 = vmatpush1.bf16.msra.mxu0 0
        %786 = vmatprep.subr.bf16.mxu0 0
        %787 = vmatpush1.bf16.msra.mxu0 0
        %788 = vmatprep.subr.bf16.mxu0 0
        %789 = vmatpush1.bf16.msra.mxu0 0
        %790 = vmatprep.subr.bf16.mxu0 0
        %791 = vmatpush1.bf16.msra.mxu0 %v774
        %792 = vmatprep.subr.bf16.mxu0 0
        %793 = vmatpush2.bf16.msra.mxu0 0
        %794 = vmatprep.subr.bf16.mxu0 0
        %795 = vmatpush2.bf16.msra.mxu0 0
        %796 = vmatprep.subr.bf16.mxu0 0
        %797 = vmatpush2.bf16.msra.mxu0 0
        %798 = vmatprep.subr.bf16.mxu0 0
        %799 = vmatpush2.bf16.msra.mxu0 0
        %800 = vmatprep.subr.bf16.mxu0 0
        %801 = vmatpush2.bf16.msra.mxu0 0
        %802 = vmatprep.subr.bf16.mxu0 0
        %803 = vmatpush2.bf16.msra.mxu0 0
        %804 = vmatprep.subr.bf16.mxu0 0
        %805 = vmatpush2.bf16.msra.mxu0 0
        %806 = vmatprep.subr.bf16.mxu0 0
        %807 = vmatpush2.bf16.msra.mxu0 0
        %808 = vmatprep.mubr.bf16.mxu0 0
        %809 = vmatmul.mubr.bf16.gmra.mxu0 %v771
        %v810 = vpop.f32.mrf.mxu0
        %v811 = vadd.f32 0.0, %v810
        %v812 = vpop.f32.mrf.mxu0
        %v813 = vpop.f32.mrf.mxu0
        %v814 = vpop.f32.mrf.mxu0
        %815 = vdwg.mxu0
        %v816 = vadd.f32 %v563, %v765
        %v817 = vadd.f32 %v567, %v811
        %v818 = vld [vmem:[%s3] sm:$0x1]
        %v819 = vld [vmem:[%s4] sm:$0x1]
        %820 = vadd.xlane.f32.xlu0 %v816
        %v821 = vpop.xlane.xlu0 %820
        %822 = vadd.xlane.f32.xlu0 %v817
        %v823 = vpop.xlane.xlu0 %822
        %v824 = vrcp.pop 128.0
        %v825 = vmul.f32 %v821, %v824
        %v826 = vmul.f32 %v823, %v824
        %v827 = vsub.f32 %v816, %v825
        %v828 = vsub.f32 %v817, %v826
        %v829 = vmul.f32 %v827, %v827
        %v830 = vmul.f32 %v828, %v828
        %831 = vadd.xlane.f32.xlu0 %v829
        %v832 = vpop.xlane.xlu0 %831
        %833 = vadd.xlane.f32.xlu0 %v830
        %v834 = vpop.xlane.xlu0 %833
        %v835 = vmul.f32 %v832, %v824
        %v836 = vmul.f32 %v834, %v824
        %v837 = vadd.f32 %v835, 1e-05
        %v838 = vadd.f32 %v836, 1e-05
        %v839 = vrsqrt.pop %v837
        %v840 = vrsqrt.pop %v838
        %v841 = vmul.f32 %v827, %v839
        %v842 = vmul.f32 %v828, %v840
        %v844 = vlaneseq
        %v845 = vshrl.u32 %v844, 7
        %v846 = vsub.s32 0, %v845
        %v847 = vrot.slane %v818, %v846
        %v849 = vmul.f32 %v841, %v847
        %v850 = vmul.f32 %v842, %v847
        %v852 = vlaneseq
        %v853 = vshrl.u32 %v852, 7
        %v854 = vsub.s32 0, %v853
        %v855 = vrot.slane %v819, %v854
        %v857 = vadd.f32 %v849, %v855
        %v858 = vadd.f32 %v850, %v855
        %v859 = vpack.c.bf16 %v858, %v857
        %v860 = vld [vmem:[#allocation7] sm:$0xff]
        %v861 = vld [vmem:[#allocation7 + $0x8] sm:$0xff]
        %v862 = vld [vmem:[#allocation7 + $0x10] sm:$0xff]
        %v863 = vld [vmem:[#allocation7 + $0x18] sm:$0xff]
        %v864 = vld [vmem:[#allocation7 + $0x20] sm:$0xff]
        %v865 = vld [vmem:[#allocation7 + $0x28] sm:$0xff]
        %v866 = vld [vmem:[#allocation7 + $0x30] sm:$0xff]
        %v867 = vld [vmem:[#allocation7 + $0x38] sm:$0xff]
        %v868 = vld [vmem:[#allocation7 + $0x40] sm:$0xff]
        %v869 = vld [vmem:[#allocation7 + $0x48] sm:$0xff]
        %v870 = vld [vmem:[#allocation7 + $0x50] sm:$0xff]
        %v871 = vld [vmem:[#allocation7 + $0x58] sm:$0xff]
        %v872 = vld [vmem:[#allocation7 + $0x60] sm:$0xff]
        %v873 = vld [vmem:[#allocation7 + $0x68] sm:$0xff]
        %v874 = vld [vmem:[#allocation7 + $0x70] sm:$0xff]
        %v875 = vld [vmem:[#allocation7 + $0x78] sm:$0xff]
        %v876 = vld [vmem:[%s6] sm:$0x3]
        %v878 = vlaneseq
        %v879 = vshrl.u32 %v878, 7
        %v880 = vsub.s32 0, %v879
        %v881 = vrot.slane %v876, %v880
        %v882 = vlaneseq
        %v883 = vshrl.u32 %v882, 7
        %v884 = vsub.s32 1, %v883
        %v885 = vrot.slane %v876, %v884
        %v904 = vunpack.c.l.b16 %v860
        %v905 = vunpack.c.h.b16 %v860
        %v906 = vunpack.c.l.b16 %v861
        %v907 = vunpack.c.h.b16 %v861
        %v908 = vunpack.c.l.b16 %v862
        %v909 = vunpack.c.h.b16 %v862
        %v910 = vunpack.c.l.b16 %v863
        %v911 = vunpack.c.h.b16 %v863
        %v912 = vunpack.c.l.b16 %v864
        %v913 = vunpack.c.h.b16 %v864
        %v914 = vunpack.c.l.b16 %v865
        %v915 = vunpack.c.h.b16 %v865
        %v916 = vunpack.c.l.b16 %v866
        %v917 = vunpack.c.h.b16 %v866
        %v918 = vunpack.c.l.b16 %v867
        %v919 = vunpack.c.h.b16 %v867
        %v920 = vunpack.c.l.b16 %v868
        %v921 = vunpack.c.h.b16 %v868
        %v922 = vunpack.c.l.b16 %v869
        %v923 = vunpack.c.h.b16 %v869
        %v924 = vunpack.c.l.b16 %v870
        %v925 = vunpack.c.h.b16 %v870
        %v926 = vunpack.c.l.b16 %v871
        %v927 = vunpack.c.h.b16 %v871
        %v928 = vunpack.c.l.b16 %v872
        %v929 = vunpack.c.h.b16 %v872
        %v930 = vunpack.c.l.b16 %v873
        %v931 = vunpack.c.h.b16 %v873
        %v932 = vunpack.c.l.b16 %v874
        %v933 = vunpack.c.h.b16 %v874
        %v934 = vunpack.c.l.b16 %v875
        %v935 = vunpack.c.h.b16 %v875
        %v936 = vpack.c.b16 %v906, %v904
        %v937 = vpack.c.b16 %v907, %v905
        %v938 = vpack.c.b16 %v910, %v908
        %v939 = vpack.c.b16 %v911, %v909
        %v940 = vpack.c.b16 %v914, %v912
        %v941 = vpack.c.b16 %v915, %v913
        %v942 = vpack.c.b16 %v918, %v916
        %v943 = vpack.c.b16 %v919, %v917
        %v944 = vpack.c.b16 %v922, %v920
        %v945 = vpack.c.b16 %v923, %v921
        %v946 = vpack.c.b16 %v926, %v924
        %v947 = vpack.c.b16 %v927, %v925
        %v948 = vpack.c.b16 %v930, %v928
        %v949 = vpack.c.b16 %v931, %v929
        %v950 = vpack.c.b16 %v934, %v932
        %v951 = vpack.c.b16 %v935, %v933
        %968 = vmatprep.subr.bf16.mxu0 %v951
        %969 = vmatpush1.bf16.msra.mxu0 %v950
        %970 = vmatprep.subr.bf16.mxu0 %v949
        %971 = vmatpush1.bf16.msra.mxu0 %v948
        %972 = vmatprep.subr.bf16.mxu0 %v947
        %973 = vmatpush1.bf16.msra.mxu0 %v946
        %974 = vmatprep.subr.bf16.mxu0 %v945
        %975 = vmatpush1.bf16.msra.mxu0 %v944
        %976 = vmatprep.subr.bf16.mxu0 %v943
        %977 = vmatpush1.bf16.msra.mxu0 %v942
        %978 = vmatprep.subr.bf16.mxu0 %v941
        %979 = vmatpush1.bf16.msra.mxu0 %v940
        %980 = vmatprep.subr.bf16.mxu0 %v939
        %981 = vmatpush1.bf16.msra.mxu0 %v938
        %982 = vmatprep.subr.bf16.mxu0 %v937
        %983 = vmatpush1.bf16.msra.mxu0 %v936
        %984 = vmatprep.subr.bf16.mxu0 0
        %985 = vmatpush2.bf16.msra.mxu0 0
        %986 = vmatprep.subr.bf16.mxu0 0
        %987 = vmatpush2.bf16.msra.mxu0 0
        %988 = vmatprep.subr.bf16.mxu0 0
        %989 = vmatpush2.bf16.msra.mxu0 0
        %990 = vmatprep.subr.bf16.mxu0 0
        %991 = vmatpush2.bf16.msra.mxu0 0
        %992 = vmatprep.subr.bf16.mxu0 0
        %993 = vmatpush2.bf16.msra.mxu0 0
        %994 = vmatprep.subr.bf16.mxu0 0
        %995 = vmatpush2.bf16.msra.mxu0 0
        %996 = vmatprep.subr.bf16.mxu0 0
        %997 = vmatpush2.bf16.msra.mxu0 0
        %998 = vmatprep.subr.bf16.mxu0 0
        %999 = vmatpush2.bf16.msra.mxu0 0
        %1000 = vmatprep.mubr.bf16.mxu0 0
        %1001 = vmatmul.mubr.bf16.gmra.mxu0 %v859
        %v1002 = vpop.f32.mrf.mxu0
        %v1003 = vadd.f32 %v881, %v1002
        %v1004 = vpop.f32.mrf.mxu0
        %v1005 = vadd.f32 %v885, %v1004
        %v1006 = vpop.f32.mrf.mxu0
        %v1007 = vadd.f32 %v881, %v1006
        %v1008 = vpop.f32.mrf.mxu0
        %v1009 = vadd.f32 %v885, %v1008
        %1010 = vdwg.mxu0
        %v1011 = vmul.f32 %v1003, 0.70710677
        %v1012 = vmul.f32 %v1005, 0.70710677
        %v1013 = vmul.f32 %v1007, 0.70710677
        %v1014 = vmul.f32 %v1009, 0.70710677
        %v1015 = vand.u32 2147483647, %v1011
        %v1016 = vand.u32 2147483647, %v1012
        %v1017 = vand.u32 2147483647, %v1013
        %v1018 = vand.u32 2147483647, %v1014
        %v1019 = vmul.f32 %v1015, 0.47047
        %v1020 = vmul.f32 %v1016, 0.47047
        %v1021 = vmul.f32 %v1017, 0.47047
        %v1022 = vmul.f32 %v1018, 0.47047
        %v1023 = vadd.f32 %v1019, 1.0
        %v1024 = vadd.f32 %v1020, 1.0
        %v1025 = vadd.f32 %v1021, 1.0
        %v1026 = vadd.f32 %v1022, 1.0
        %v1027 = vrcp.pop %v1023
        %v1028 = vrcp.pop %v1024
        %v1029 = vrcp.pop %v1025
        %v1030 = vrcp.pop %v1026
        %v1031 = vmul.f32 %v1027, 0.7478556
        %v1032 = vmul.f32 %v1028, 0.7478556
        %v1033 = vmul.f32 %v1029, 0.7478556
        %v1034 = vmul.f32 %v1030, 0.7478556
        %v1035 = vsub.f32 %v1031, 0.0958798
        %v1036 = vsub.f32 %v1032, 0.0958798
        %v1037 = vsub.f32 %v1033, 0.0958798
        %v1038 = vsub.f32 %v1034, 0.0958798
        %v1039 = vmul.f32 %v1035, %v1027
        %v1040 = vmul.f32 %v1036, %v1028
        %v1041 = vmul.f32 %v1037, %v1029
        %v1042 = vmul.f32 %v1038, %v1030
        %v1043 = vadd.f32 %v1039, 0.3480242
        %v1044 = vadd.f32 %v1040, 0.3480242
        %v1045 = vadd.f32 %v1041, 0.3480242
        %v1046 = vadd.f32 %v1042, 0.3480242
        %v1047 = vmul.f32 %v1043, %v1027
        %v1048 = vmul.f32 %v1044, %v1028
        %v1049 = vmul.f32 %v1045, %v1029
        %v1050 = vmul.f32 %v1046, %v1030
        %v1051 = vsub.f32 0.0, %v1015
        %v1052 = vsub.f32 0.0, %v1016
        %v1053 = vsub.f32 0.0, %v1017
        %v1054 = vsub.f32 0.0, %v1018
        %v1055 = vmul.f32 %v1051, %v1015
        %v1056 = vmul.f32 %v1052, %v1016
        %v1057 = vmul.f32 %v1053, %v1017
        %v1058 = vmul.f32 %v1054, %v1018
        %v1059 = vmul.f32 %v1055, 1.442695
        %v1060 = vpow.pop %v1059
        %v1061 = vmul.f32 %v1056, 1.442695
        %v1062 = vpow.pop %v1061
        %v1063 = vmul.f32 %v1057, 1.442695
        %v1064 = vpow.pop %v1063
        %v1065 = vmul.f32 %v1058, 1.442695
        %v1066 = vpow.pop %v1065
        %v1067 = vmul.f32 %v1047, %v1060
        %v1068 = vmul.f32 %v1048, %v1062
        %v1069 = vmul.f32 %v1049, %v1064
        %v1070 = vmul.f32 %v1050, %v1066
        %v1071 = vsub.f32 1.0, %v1067
        %v1072 = vsub.f32 1.0, %v1068
        %v1073 = vsub.f32 1.0, %v1069
        %v1074 = vsub.f32 1.0, %v1070
        %vm1075 = vcmp.ge.f32.partialorder %v1011, 0.0
        %vm1076 = vcmp.ge.f32.partialorder %v1012, 0.0
        %vm1077 = vcmp.ge.f32.partialorder %v1013, 0.0
        %vm1078 = vcmp.ge.f32.partialorder %v1014, 0.0
        %v1079 = vsub.f32 0.0, %v1071
        %v1080 = vsub.f32 0.0, %v1072
        %v1081 = vsub.f32 0.0, %v1073
        %v1082 = vsub.f32 0.0, %v1074
        %v1083 = vsel %vm1075, %v1071, %v1079
        %v1084 = vsel %vm1076, %v1072, %v1080
        %v1085 = vsel %vm1077, %v1073, %v1081
        %v1086 = vsel %vm1078, %v1074, %v1082
        %v1087 = vmul.f32 %v1003, 0.5
        %v1088 = vmul.f32 %v1005, 0.5
        %v1089 = vmul.f32 %v1007, 0.5
        %v1090 = vmul.f32 %v1009, 0.5
        %v1091 = vadd.f32 %v1083, 1.0
        %v1092 = vadd.f32 %v1084, 1.0
        %v1093 = vadd.f32 %v1085, 1.0
        %v1094 = vadd.f32 %v1086, 1.0
        %v1095 = vmul.f32 %v1087, %v1091
        %v1096 = vmul.f32 %v1088, %v1092
        %v1097 = vmul.f32 %v1089, %v1093
        %v1098 = vmul.f32 %v1090, %v1094
        %v1099 = vpack.c.bf16 %v1097, %v1095
        %v1100 = vpack.c.bf16 %v1098, %v1096
        %v1101 = vld [vmem:[#allocation8] sm:$0xf]
        %v1102 = vld [vmem:[#allocation8 + $0x4] sm:$0xf]
        %v1103 = vld [vmem:[#allocation8 + $0x8] sm:$0xf]
        %v1104 = vld [vmem:[#allocation8 + $0xc] sm:$0xf]
        %v1105 = vld [vmem:[#allocation8 + $0x10] sm:$0xf]
        %v1106 = vld [vmem:[#allocation8 + $0x14] sm:$0xf]
        %v1107 = vld [vmem:[#allocation8 + $0x18] sm:$0xf]
        %v1108 = vld [vmem:[#allocation8 + $0x1c] sm:$0xf]
        %v1109 = vld [vmem:[#allocation8 + $0x20] sm:$0xf]
        %v1110 = vld [vmem:[#allocation8 + $0x24] sm:$0xf]
        %v1111 = vld [vmem:[#allocation8 + $0x28] sm:$0xf]
        %v1112 = vld [vmem:[#allocation8 + $0x2c] sm:$0xf]
        %v1113 = vld [vmem:[#allocation8 + $0x30] sm:$0xf]
        %v1114 = vld [vmem:[#allocation8 + $0x34] sm:$0xf]
        %v1115 = vld [vmem:[#allocation8 + $0x38] sm:$0xf]
        %v1116 = vld [vmem:[#allocation8 + $0x3c] sm:$0xf]
        %v1117 = vld [vmem:[#allocation8 + $0x40] sm:$0xf]
        %v1118 = vld [vmem:[#allocation8 + $0x44] sm:$0xf]
        %v1119 = vld [vmem:[#allocation8 + $0x48] sm:$0xf]
        %v1120 = vld [vmem:[#allocation8 + $0x4c] sm:$0xf]
        %v1121 = vld [vmem:[#allocation8 + $0x50] sm:$0xf]
        %v1122 = vld [vmem:[#allocation8 + $0x54] sm:$0xf]
        %v1123 = vld [vmem:[#allocation8 + $0x58] sm:$0xf]
        %v1124 = vld [vmem:[#allocation8 + $0x5c] sm:$0xf]
        %v1125 = vld [vmem:[#allocation8 + $0x60] sm:$0xf]
        %v1126 = vld [vmem:[#allocation8 + $0x64] sm:$0xf]
        %v1127 = vld [vmem:[#allocation8 + $0x68] sm:$0xf]
        %v1128 = vld [vmem:[#allocation8 + $0x6c] sm:$0xf]
        %v1129 = vld [vmem:[#allocation8 + $0x70] sm:$0xf]
        %v1130 = vld [vmem:[#allocation8 + $0x74] sm:$0xf]
        %v1131 = vld [vmem:[#allocation8 + $0x78] sm:$0xf]
        %v1132 = vld [vmem:[#allocation8 + $0x7c] sm:$0xf]
        %v1133 = vld [vmem:[#allocation10] sm:$0x1]
        %v1135 = vlaneseq
        %v1136 = vshrl.u32 %v1135, 7
        %v1137 = vsub.s32 0, %v1136
        %v1138 = vrot.slane %v1133, %v1137
        %v1172 = vunpack.c.l.b16 %v1101
        %v1173 = vunpack.c.l.b16 %v1102
        %v1174 = vunpack.c.l.b16 %v1103
        %v1175 = vunpack.c.l.b16 %v1104
        %v1176 = vunpack.c.l.b16 %v1105
        %v1177 = vunpack.c.l.b16 %v1106
        %v1178 = vunpack.c.l.b16 %v1107
        %v1179 = vunpack.c.l.b16 %v1108
        %v1180 = vunpack.c.l.b16 %v1109
        %v1181 = vunpack.c.l.b16 %v1110
        %v1182 = vunpack.c.l.b16 %v1111
        %v1183 = vunpack.c.l.b16 %v1112
        %v1184 = vunpack.c.l.b16 %v1113
        %v1185 = vunpack.c.l.b16 %v1114
        %v1186 = vunpack.c.l.b16 %v1115
        %v1187 = vunpack.c.l.b16 %v1116
        %v1188 = vunpack.c.l.b16 %v1117
        %v1189 = vunpack.c.l.b16 %v1118
        %v1190 = vunpack.c.l.b16 %v1119
        %v1191 = vunpack.c.l.b16 %v1120
        %v1192 = vunpack.c.l.b16 %v1121
        %v1193 = vunpack.c.l.b16 %v1122
        %v1194 = vunpack.c.l.b16 %v1123
        %v1195 = vunpack.c.l.b16 %v1124
        %v1196 = vunpack.c.l.b16 %v1125
        %v1197 = vunpack.c.l.b16 %v1126
        %v1198 = vunpack.c.l.b16 %v1127
        %v1199 = vunpack.c.l.b16 %v1128
        %v1200 = vunpack.c.l.b16 %v1129
        %v1201 = vunpack.c.l.b16 %v1130
        %v1202 = vunpack.c.l.b16 %v1131
        %v1203 = vunpack.c.l.b16 %v1132
        %v1204 = vpack.c.b16 %v1173, %v1172
        %v1205 = vpack.c.b16 %v1175, %v1174
        %v1206 = vpack.c.b16 %v1177, %v1176
        %v1207 = vpack.c.b16 %v1179, %v1178
        %v1208 = vpack.c.b16 %v1181, %v1180
        %v1209 = vpack.c.b16 %v1183, %v1182
        %v1210 = vpack.c.b16 %v1185, %v1184
        %v1211 = vpack.c.b16 %v1187, %v1186
        %v1212 = vpack.c.b16 %v1189, %v1188
        %v1213 = vpack.c.b16 %v1191, %v1190
        %v1214 = vpack.c.b16 %v1193, %v1192
        %v1215 = vpack.c.b16 %v1195, %v1194
        %v1216 = vpack.c.b16 %v1197, %v1196
        %v1217 = vpack.c.b16 %v1199, %v1198
        %v1218 = vpack.c.b16 %v1201, %v1200
        %v1219 = vpack.c.b16 %v1203, %v1202
        %1236 = vmatprep.subr.bf16.mxu0 0
        %1237 = vmatpush1.bf16.msra.mxu0 %v1211
        %1238 = vmatprep.subr.bf16.mxu0 0
        %1239 = vmatpush1.bf16.msra.mxu0 %v1210
        %1240 = vmatprep.subr.bf16.mxu0 0
        %1241 = vmatpush1.bf16.msra.mxu0 %v1209
        %1242 = vmatprep.subr.bf16.mxu0 0
        %1243 = vmatpush1.bf16.msra.mxu0 %v1208
        %1244 = vmatprep.subr.bf16.mxu0 0
        %1245 = vmatpush1.bf16.msra.mxu0 %v1207
        %1246 = vmatprep.subr.bf16.mxu0 0
        %1247 = vmatpush1.bf16.msra.mxu0 %v1206
        %1248 = vmatprep.subr.bf16.mxu0 0
        %1249 = vmatpush1.bf16.msra.mxu0 %v1205
        %1250 = vmatprep.subr.bf16.mxu0 0
        %1251 = vmatpush1.bf16.msra.mxu0 %v1204
        %1252 = vmatprep.subr.bf16.mxu0 0
        %1253 = vmatpush2.bf16.msra.mxu0 %v1219
        %1254 = vmatprep.subr.bf16.mxu0 0
        %1255 = vmatpush2.bf16.msra.mxu0 %v1218
        %1256 = vmatprep.subr.bf16.mxu0 0
        %1257 = vmatpush2.bf16.msra.mxu0 %v1217
        %1258 = vmatprep.subr.bf16.mxu0 0
        %1259 = vmatpush2.bf16.msra.mxu0 %v1216
        %1260 = vmatprep.subr.bf16.mxu0 0
        %1261 = vmatpush2.bf16.msra.mxu0 %v1215
        %1262 = vmatprep.subr.bf16.mxu0 0
        %1263 = vmatpush2.bf16.msra.mxu0 %v1214
        %1264 = vmatprep.subr.bf16.mxu0 0
        %1265 = vmatpush2.bf16.msra.mxu0 %v1213
        %1266 = vmatprep.subr.bf16.mxu0 0
        %1267 = vmatpush2.bf16.msra.mxu0 %v1212
        %1268 = vmatprep.mubr.bf16.mxu0 %v1100
        %1269 = vmatmul.mubr.bf16.gmra.mxu0 %v1099
        %v1270 = vpop.f32.mrf.mxu0
        %v1271 = vadd.f32 %v1138, %v1270
        %v1272 = vpop.f32.mrf.mxu0
        %v1273 = vpop.f32.mrf.mxu0
        %v1274 = vadd.f32 %v1138, %v1273
        %v1275 = vpop.f32.mrf.mxu0
        %1276 = vdwg.mxu0
        %v1277 = vadd.f32 %v857, %v1271
        %v1278 = vadd.f32 %v858, %v1274
        %v1279 = vld [vmem:[%s9] sm:$0x1]
        %v1280 = vld [vmem:[%s10] sm:$0x1]
        %1281 = vadd.xlane.f32.xlu0 %v1277
        %v1282 = vpop.xlane.xlu0 %1281
        %1283 = vadd.xlane.f32.xlu0 %v1278
        %v1284 = vpop.xlane.xlu0 %1283
        %v1285 = vmul.f32 %v1282, %v824
        %v1286 = vmul.f32 %v1284, %v824
        %v1287 = vsub.f32 %v1277, %v1285
        %v1288 = vsub.f32 %v1278, %v1286
        %v1289 = vmul.f32 %v1287, %v1287
        %v1290 = vmul.f32 %v1288, %v1288
        %1291 = vadd.xlane.f32.xlu0 %v1289
        %v1292 = vpop.xlane.xlu0 %1291
        %1293 = vadd.xlane.f32.xlu0 %v1290
        %v1294 = vpop.xlane.xlu0 %1293
        %v1295 = vmul.f32 %v1292, %v824
        %v1296 = vmul.f32 %v1294, %v824
        %v1297 = vadd.f32 %v1295, 1e-05
        %v1298 = vadd.f32 %v1296, 1e-05
        %v1299 = vrsqrt.pop %v1297
        %v1300 = vrsqrt.pop %v1298
        %v1301 = vmul.f32 %v1287, %v1299
        %v1302 = vmul.f32 %v1288, %v1300
        %v1304 = vlaneseq
        %v1305 = vshrl.u32 %v1304, 7
        %v1306 = vsub.s32 0, %v1305
        %v1307 = vrot.slane %v1279, %v1306
        %v1309 = vmul.f32 %v1301, %v1307
        %v1310 = vmul.f32 %v1302, %v1307
        %v1312 = vlaneseq
        %v1313 = vshrl.u32 %v1312, 7
        %v1314 = vsub.s32 0, %v1313
        %v1315 = vrot.slane %v1280, %v1314
        %v1317 = vadd.f32 %v1309, %v1315
        %v1318 = vadd.f32 %v1310, %v1315
        %1319 = vst [vmem:[%s460] sm:$0xff] %v1317
        %1320 = vst [vmem:[%s460 + $0x8] sm:$0xff] %v1318
        %s1321 = sand.u32 %s274, 1
        %s1322 = scalar_lea.sflag [#allocation4], %s1321
        %s1323 = sand.u32 %s274, 1
        %s1324 = smul.addr %s1323, 16
        %s1325 = scalar_lea.vmem [#allocation11], %s1324
        // Predicated region
        $region85: #{_lambda_.1} parent=63 // pred_check
          %p1326 = pneg %p284
        $region86: #{_lambda_.1} parent=63 // pred_check_branch
          %1328 = sbr.rel (%p1326) target = $region88
        $region87: #{_lambda_.1} parent=63 // pred_region
          %s1329 = smul.u32 2, %s30
          %s1331 = ssub.s32 256, 256
          %1332 = vsyncadd %s1322, %s1331
          %s1333 = smul.addr %s1329, 128
          %s1334 = scalar_lea.hbm %s11, %s1333
          %s1335 = sshll.u32 %s1325, 4
          %s1336 = int_to_ptr.vmem [resolvable:$true] %s1335
          %1341 = dma.vmem_to_hbm [thread:$0]  %s1336, 256, %s1334, %s1322, 128, 128, 8
        $region88: #{_lambda_.1} parent=63 // pred_fallthru
          _
      $region64: #{_lambda_.1} parent=5 // pred_fallthru
        _
      %p1342 = scmp.le.s32.totalorder 2, %s25
      // Predicated region
      $region89: #{_lambda_.1} parent=5 // pred_check
        %p1343 = pneg %p1342
      $region90: #{_lambda_.1} parent=5 // pred_check_branch
        %1345 = sbr.rel (%p1343) target = $region92
      $region91: #{_lambda_.1} parent=5 // pred_region
        %s1346 = ssub.s32 %s25, 2
        // Predicated region
        $region93: #{_lambda_.1} parent=91 // pred_check
          %p1347 = pneg %p290
        $region94: #{_lambda_.1} parent=91 // pred_check_branch
          %1349 = sbr.rel (%p1347) target = $region96
        $region95: #{_lambda_.1} parent=91 // pred_region
          %s1350 = sand.u32 %s275, 1
          %s1351 = scalar_lea.sflag [#allocation4], %s1350
          %s1352 = sand.u32 %s275, 1
          %s1353 = smul.addr %s1352, 16
          %s1354 = scalar_lea.vmem [#allocation11], %s1353
          %1355 = dma.done %s1351, 256
        $region96: #{_lambda_.1} parent=91 // pred_fallthru
          _
      $region92: #{_lambda_.1} parent=5 // pred_fallthru
        _
    $region6: #{_lambda_.1} parent=1 // loop_footer
      %s29 = sadd.s32 1, %s25
    $region7: #{_lambda_.1} parent=1 // loop_footer_branch
      %24 = sbr.rel target = $region3
    $region8: #{_lambda_.1} parent=1 // loop_exit
      _
    %1356 = vsyncpa [#allocation3], 1
    %s1357 = scalar_lea.sflag [#allocation3], 1
    %1358 = vsyncpa %s1357, 1
    %1359 = vsyncpa [#allocation6], 1
    %1360 = vsyncpa [#allocation9], 1
    %1361 = vsyncpa [#allocation4], 1
    %s1362 = scalar_lea.sflag [#allocation4], 1
    %1363 = vsyncpa %s1362, 1

</llo_original>
